<compile_context>
chip_gen: v5e
topology: v5e:2x2
jax: 0.10.0
libtpu: 0.0.40
codegen_flags: <defaults>
</compile_context>

<pallas_src>
import jax
import jax.numpy as jnp
import numpy as np
from jax.experimental import pallas as pl
from jax.experimental.pallas import tpu as pltpu


# ----------------------------------------------------------------------------
# Helpers: tile sizing / padding
# ----------------------------------------------------------------------------
def _round_up(x, m):
    return ((x + m - 1) // m) * m


def _tiles(n, tm, tk):
    tm_eff = min(tm, _round_up(n, 8))      # row tile: sublane (8) alignment
    tk_eff = min(tk, _round_up(n, 128))    # contraction tile: lane (128) align
    return tm_eff, tk_eff, _round_up(n, tm_eff), _round_up(n, tk_eff)


def prepare_adj(adj, tm=256, tk=512):
    """Pad + bf16-cast adj once, OUTSIDE the per-step jit.

    adj_norm is constant across DGI training iterations, so this traffic is
    hoisted off the hot path instead of being paid on every forward call.
    """
    n = adj.shape[0]
    _, _, n_rows, n_cols = _tiles(n, tm, tk)
    return jnp.pad(adj, ((0, n_rows - n), (0, n_cols - n))).astype(jnp.bfloat16)


# ----------------------------------------------------------------------------
# Kernel A: XW = [seq1 @ Wg | seq2 @ Wg], emitted in bf16 for the adj matmul.
# ----------------------------------------------------------------------------
def xw_kernel(seq1_ref, seq2_ref, wg_ref, xw_ref):
    wg = wg_ref[...]
    x1 = jnp.dot(seq1_ref[...], wg, preferred_element_type=jnp.float32)
    x2 = jnp.dot(seq2_ref[...], wg, preferred_element_type=jnp.float32)
    xw_ref[...] = jnp.concatenate([x1, x2], axis=1).astype(xw_ref.dtype)


# ----------------------------------------------------------------------------
# Kernel B: H = PReLU(adj @ XW + [bg|bg]) on a (row, contraction) grid.
#   - XW is a single VMEM-resident block; per-k slice via pl.ds.
#   - Accumulation goes directly into the resident h output block (no scratch).
#   - Masked per-row-tile column sums are emitted for the (hoisted) readout.
# ----------------------------------------------------------------------------
def gcn_kernel(adj_ref, xw_ref, b2_ref, alpha_ref, nreal_ref, h_ref, hsum_ref):
    i = pl.program_id(0)
    k = pl.program_id(1)
    tk = adj_ref.shape[1]

    @pl.when(k == 0)
    def _init():
        h_ref[...] = jnp.zeros_like(h_ref)

    start = pl.multiple_of(k * tk, tk)
    xw_blk = xw_ref[pl.ds(start, tk), :]           # slice of resident XW (bf16)
    h_ref[...] += jnp.dot(adj_ref[...], xw_blk,
                          preferred_element_type=jnp.float32)

    @pl.when(k == pl.num_programs(1) - 1)
    def _finalize():
        alpha = alpha_ref[0, 0]                    # learned PReLU slope
        hcat = h_ref[...] + b2_ref[...]            # f32 bias
        hcat = jnp.where(hcat > 0, hcat, alpha * hcat)
        h_ref[...] = hcat

        tm = h_ref.shape[0]
        rows = i * tm + jax.lax.broadcasted_iota(jnp.int32, (tm, 1), 0)
        masked = jnp.where(rows < nreal_ref[0, 0], hcat, 0.0)   # drop pad rows
        hsum_ref[...] = jnp.sum(masked, axis=0, keepdims=True).reshape(
            hsum_ref.shape)


# ----------------------------------------------------------------------------
# Kernel C: bilinear discriminator, lane-dense (4, N) output.
#   rows 0,1 = scores of h1 (vs Wd0@c, Wd1@c); rows 2,3 = scores of h2.
#   The h1/h2 split is encoded in wc2t's block structure, so no lane slicing.
# ----------------------------------------------------------------------------
def scores_kernel(h_ref, wc2t_ref, b4_ref, out_ref):
    dn = (((1,), (1,)), ((), ()))                  # contract the 2H dims
    s = jax.lax.dot_general(wc2t_ref[...], h_ref[...], dn,
                            preferred_element_type=jnp.float32)   # (4, tile)
    out_ref[...] = s + b4_ref[...]


# ----------------------------------------------------------------------------
# Wrapper
# ----------------------------------------------------------------------------
def dgi_forward(seq1, seq2, adj_b16, params, prelu_alpha, *, tm=256, tk=512):
    """Pallas-backed DGI.forward: returns logits of shape (2N, 2).

    `adj_b16` must be produced by prepare_adj(adj, tm, tk) (padded, bf16).
    """
    n, f = seq1.shape
    nh = params["w_gcn"].shape[1]
    tm_eff, tk_eff, n_rows, n_cols = _tiles(n, tm, tk)
    assert adj_b16.shape == (n_rows, n_cols), (adj_b16.shape, (n_rows, n_cols))
    assert adj_b16.dtype == jnp.bfloat16
    g_rows = n_rows // tm_eff
    g_k = n_cols // tk_eff

    seq1p = jnp.pad(seq1, ((0, n_cols - n), (0, 0)))
    seq2p = jnp.pad(seq2, ((0, n_cols - n), (0, 0)))

    # --- Kernel A: feature transform for both branches (bf16 output) --------
    xw = pl.pallas_call(
        xw_kernel,
        out_shape=jax.ShapeDtypeStruct((n_cols, 2 * nh), jnp.bfloat16),
        grid=(g_k,),
        in_specs=[pl.BlockSpec((tk_eff, f), lambda i: (i, 0)),
                  pl.BlockSpec((tk_eff, f), lambda i: (i, 0)),
                  pl.BlockSpec((f, nh), lambda i: (0, 0))],
        out_specs=pl.BlockSpec((tk_eff, 2 * nh), lambda i: (i, 0)),
        compiler_params=pltpu.CompilerParams(
            dimension_semantics=("parallel",)),
    )(seq1p, seq2p, params["w_gcn"])

    # --- Kernel B: fused two-branch GCN, tiled adj matmul, resident XW ------
    b2 = jnp.concatenate([params["b_gcn"], params["b_gcn"]], axis=1)  # (1, 2H)
    alpha_arr = jnp.full((1, 1), prelu_alpha, dtype=jnp.float32)
    nreal_arr = jnp.full((1, 1), n, dtype=jnp.int32)

    hcat, hsum_parts = pl.pallas_call(
        gcn_kernel,
        out_shape=(jax.ShapeDtypeStruct((n_rows, 2 * nh), jnp.float32),
                   jax.ShapeDtypeStruct((g_rows, 1, 2 * nh), jnp.float32)),
        grid=(g_rows, g_k),                 # (row tiles, contraction tiles)
        in_specs=[pl.BlockSpec((tm_eff, tk_eff), lambda i, k: (i, k)),
                  # XW fully resident: one HBM read for the whole grid.
                  pl.BlockSpec((n_cols, 2 * nh), lambda i, k: (0, 0)),
                  pl.BlockSpec((1, 2 * nh), lambda i, k: (0, 0)),
                  pl.BlockSpec(memory_space=pltpu.MemorySpace.SMEM),
                  pl.BlockSpec(memory_space=pltpu.MemorySpace.SMEM)],
        out_specs=(pl.BlockSpec((tm_eff, 2 * nh), lambda i, k: (i, 0)),
                   pl.BlockSpec((1, 1, 2 * nh), lambda i, k: (i, 0, 0))),
        compiler_params=pltpu.CompilerParams(
            dimension_semantics=("parallel", "arbitrary"),
            vmem_limit_bytes=48 * 1024 * 1024),   # under v7x 64 MiB physical
    )(adj_b16, xw, b2, alpha_arr, nreal_arr)

    # --- Hoisted readout (tiny, computed once): c and wc --------------------
    col_sum = jnp.sum(hsum_parts, axis=0)[0]            # (2H,)
    c = jax.nn.sigmoid(col_sum[:nh] * (1.0 / n))        # (H,)
    wc = jnp.einsum("kij,j->ki", params["w_disc"], c)   # (2, H)
    zeros = jnp.zeros((2, nh), jnp.float32)
    # Block-structured (4, 2H) weight: rows 0,1 act on the h1 half, rows 2,3
    # on the h2 half, so kernel C needs no sub-128-lane slicing of h.
    wc2t = jnp.concatenate([jnp.concatenate([wc, zeros], axis=1),
                            jnp.concatenate([zeros, wc], axis=1)], axis=0)
    b4 = jnp.tile(params["b_disc"], (2, 1)).reshape(4, 1)   # [b0,b1,b0,b1]

    # --- Kernel C: bilinear scores, lane-dense (4, N) output ----------------
    scores = pl.pallas_call(
        scores_kernel,
        out_shape=jax.ShapeDtypeStruct((4, n_rows), jnp.float32),
        grid=(g_rows,),
        in_specs=[pl.BlockSpec((tm_eff, 2 * nh), lambda j: (j, 0)),
                  pl.BlockSpec((4, 2 * nh), lambda j: (0, 0)),
                  pl.BlockSpec((4, 1), lambda j: (0, 0))],
        out_specs=pl.BlockSpec((4, tm_eff), lambda j: (0, j)),
        compiler_params=pltpu.CompilerParams(
            dimension_semantics=("parallel",)),
    )(hcat, wc2t, b4)

    # Restore torch (2N, 2) layout (cheap transpose of the lane-dense output).
    logits = jnp.concatenate([scores[0:2, :n].T, scores[2:4, :n].T], axis=0)
    return logits


# ----------------------------------------------------------------------------
# Pure-JAX reference
# ----------------------------------------------------------------------------
def dgi_ref(seq1, seq2, adj, params, prelu_alpha, match_kernel_bf16=True):
    wg, bg = params["w_gcn"], params["b_gcn"]
    xw1 = jnp.dot(seq1, wg)
    xw2 = jnp.dot(seq2, wg)
    if match_kernel_bf16:     # mirror the kernel's bf16 adj-matmul operands
        adj_m = adj.astype(jnp.bfloat16)
        xw1 = xw1.astype(jnp.bfloat16)
        xw2 = xw2.astype(jnp.bfloat16)
    else:
        adj_m = adj

    def gcn(xw):
        h = jnp.dot(adj_m, xw, preferred_element_type=jnp.float32) + bg
        return jnp.where(h > 0, h, prelu_alpha * h)

    h1, h2 = gcn(xw1), gcn(xw2)
    c = jax.nn.sigmoid(jnp.mean(h1, axis=0))                 # (H,)
    wc = jnp.einsum("kij,j->ki", params["w_disc"], c)        # (2, H)
    sc1 = h1 @ wc.T + params["b_disc"]
    sc2 = h2 @ wc.T + params["b_disc"]
    return jnp.concatenate([sc1, sc2], axis=0)


if __name__ == "__main__":
    N, F_IN, NHID = 200, 48, 32   # nodes, input features, nhid

    key = jax.random.PRNGKey(0)
    k1, k2, k3, k4, k5, k6, k7 = jax.random.split(key, 7)

    # processed_data.features and its row permutation (shuf_fts)
    features = jax.random.normal(k1, (N, F_IN), dtype=jnp.float32)
    perm = jax.random.permutation(k2, N)
    shuf_fts = features[perm, :]

    # dense normalized adjacency: symmetric + self loops, row-normalized
    a = (jax.random.uniform(k3, (N, N)) < 0.05).astype(jnp.float32)
    a = jnp.maximum(a, a.T) + jnp.eye(N, dtype=jnp.float32)
    adj = a / jnp.sum(a, axis=1, keepdims=True)

    params = {
        "w_gcn": 0.1 * jax.random.normal(k4, (F_IN, NHID), dtype=jnp.float32),
        "b_gcn": 0.01 * jax.random.normal(k5, (1, NHID), dtype=jnp.float32),
        "w_disc": 0.1 * jax.random.normal(k6, (2, NHID, NHID), dtype=jnp.float32),
        "b_disc": 0.01 * jax.random.normal(k7, (1, 2), dtype=jnp.float32),
    }
    prelu_alpha = 0.25    # nn.PReLU() init value; passed as a parameter

    # adj_norm is constant across DGI training steps: pad + bf16-cast it once,
    # outside the jitted forward (hoisted off the per-call hot path).
    adj_b16 = jax.block_until_ready(prepare_adj(adj))

    dgi_fn = jax.jit(dgi_forward)
    logits = jax.block_until_ready(
        dgi_fn(features, shuf_fts, adj_b16, params, prelu_alpha))
    assert logits.shape == (2 * N, 2), logits.shape

    # Tight check vs a reference that uses the same bf16 matmul operands.
    ref_match = jax.block_until_ready(
        dgi_ref(features, shuf_fts, adj, params, prelu_alpha, True))
    np.testing.assert_allclose(np.asarray(logits), np.asarray(ref_match),
                               rtol=1e-3, atol=1e-4)

    # Looser sanity check vs the full-f32 reference (bf16 adj-matmul error).
    ref_f32 = jax.block_until_ready(
        dgi_ref(features, shuf_fts, adj, params, prelu_alpha, False))
    np.testing.assert_allclose(np.asarray(logits), np.asarray(ref_f32),
                               rtol=5e-2, atol=3e-2)

    # TODO(synk): BCEWithLogitsLoss / softmax-entropy of make_loss are training
    # losses, not part of forward(); left to host-side JAX if ever needed.
    print("KERNEL_OK")
</pallas_src>

<mosaic_0001>
module attributes {stable_mosaic.version = 11 : i64} {
  func.func @xw_kernel(%arg0: i32, %arg1: memref<256x48xf32, #tpu.memory_space<vmem>>, %arg2: memref<256x48xf32, #tpu.memory_space<vmem>>, %arg3: memref<48x32xf32, #tpu.memory_space<vmem>>, %arg4: memref<256x64xbf16, #tpu.memory_space<vmem>>) attributes {dimension_semantics = [#tpu.dimension_semantics<parallel>], iteration_bounds = array<i64: 1>, scalar_prefetch = 0 : i64, scratch_operands = 0 : i64, tpu.core_type = #tpu.core_type<tc>, window_params = [{transform_indices = @transform_0, window_bounds = array<i64: 256, 48>}, {transform_indices = @transform_1, window_bounds = array<i64: 256, 48>}, {pipeline_mode = #tpu.pipeline_mode<synchronous>, transform_indices = @transform_2, window_bounds = array<i64: 48, 32>}, {transform_indices = @transform_3, window_bounds = array<i64: 256, 64>}]} {
    %c0 = arith.constant 0 : index
    %c0_0 = arith.constant 0 : index
    %0 = vector.load %arg3[%c0, %c0_0] : memref<48x32xf32, #tpu.memory_space<vmem>>, vector<48x32xf32>
    %c0_1 = arith.constant 0 : index
    %c0_2 = arith.constant 0 : index
    %1 = vector.load %arg1[%c0_1, %c0_2] : memref<256x48xf32, #tpu.memory_space<vmem>>, vector<256x48xf32>
    %cst = arith.constant dense<0.000000e+00> : vector<256x32xf32>
    %2 = tpu.matmul %1, %0, %cst {dimension_numbers = #tpu.dot_dimension_numbers<[1], [0], [0], [1], [0, 0, 1, 1], [], []>} : vector<256x48xf32>, vector<48x32xf32>, vector<256x32xf32> -> vector<256x32xf32>
    %c0_3 = arith.constant 0 : index
    %c0_4 = arith.constant 0 : index
    %3 = vector.load %arg2[%c0_3, %c0_4] : memref<256x48xf32, #tpu.memory_space<vmem>>, vector<256x48xf32>
    %cst_5 = arith.constant dense<0.000000e+00> : vector<256x32xf32>
    %4 = tpu.matmul %3, %0, %cst_5 {dimension_numbers = #tpu.dot_dimension_numbers<[1], [0], [0], [1], [0, 0, 1, 1], [], []>} : vector<256x48xf32>, vector<48x32xf32>, vector<256x32xf32> -> vector<256x32xf32>
    %5 = tpu.concatenate %2, %4 in 1 : vector<256x32xf32>, vector<256x32xf32> -> vector<256x64xf32>
    %6 = arith.truncf %5 : vector<256x64xf32> to vector<256x64xbf16>
    %c0_6 = arith.constant 0 : index
    %c0_7 = arith.constant 0 : index
    %7 = vector.load %arg4[%c0_6, %c0_7] : memref<256x64xbf16, #tpu.memory_space<vmem>>, vector<256x64xbf16>
    tpu.vector_store %arg4[%c0_6, %c0_7], %6 {strides = array<i32>} : memref<256x64xbf16, #tpu.memory_space<vmem>>, vector<256x64xbf16>,
    return
  }
  func.func @transform_0(%arg0: i32) -> (i32, i32) {
    %c0_i32 = arith.constant 0 : i32
    %c0_i32_0 = arith.constant 0 : i32
    return %arg0, %c0_i32 : i32, i32
  }
  func.func @transform_1(%arg0: i32) -> (i32, i32) {
    %c0_i32 = arith.constant 0 : i32
    %c0_i32_0 = arith.constant 0 : i32
    return %arg0, %c0_i32 : i32, i32
  }
  func.func @transform_2(%arg0: i32) -> (i32, i32) {
    %c0_i32 = arith.constant 0 : i32
    %c0_i32_0 = arith.constant 0 : i32
    %c0_i32_1 = arith.constant 0 : i32
    return %c0_i32, %c0_i32_0 : i32, i32
  }
  func.func @transform_3(%arg0: i32) -> (i32, i32) {
    %c0_i32 = arith.constant 0 : i32
    %c0_i32_0 = arith.constant 0 : i32
    return %arg0, %c0_i32 : i32, i32
  }
}

module attributes {stable_mosaic.version = 11 : i64} {
  func.func @gcn_kernel(%arg0: i32, %arg1: i32, %arg2: memref<200x256xbf16, #tpu.memory_space<vmem>>, %arg3: memref<256x64xbf16, #tpu.memory_space<vmem>>, %arg4: memref<1x64xf32, #tpu.memory_space<vmem>>, %arg5: memref<1x1xf32, #tpu.memory_space<smem>>, %arg6: memref<1x1xi32, #tpu.memory_space<smem>>, %arg7: memref<200x64xf32, #tpu.memory_space<vmem>>, %arg8: memref<1x1x64xf32, #tpu.memory_space<vmem>>) attributes {dimension_semantics = [#tpu.dimension_semantics<parallel>, #tpu.dimension_semantics<arbitrary>], iteration_bounds = array<i64: 1, 1>, scalar_prefetch = 0 : i64, scratch_operands = 0 : i64, tpu.core_type = #tpu.core_type<tc>, window_params = [{transform_indices = @transform_0, window_bounds = array<i64: 200, 256>}, {pipeline_mode = #tpu.pipeline_mode<synchronous>, transform_indices = @transform_1, window_bounds = array<i64: 256, 64>}, {pipeline_mode = #tpu.pipeline_mode<synchronous>, transform_indices = @transform_2, window_bounds = array<i64: 1, 64>}, {transform_indices = @transform_3, window_bounds = array<i64: 1, 1>}, {transform_indices = @transform_4, window_bounds = array<i64: 1, 1>}, {transform_indices = @transform_5, window_bounds = array<i64: 200, 64>}, {transform_indices = @transform_6, window_bounds = array<i64: 1, 1, 64>}]} {
    %c0_i32 = arith.constant 0 : i32
    %0 = arith.cmpi eq, %arg1, %c0_i32 : i32
    %1 = arith.extui %0 : i1 to i32
    %c0_i32_0 = arith.constant 0 : i32
    %2 = arith.cmpi ne, %1, %c0_i32_0 : i32
    scf.if %2 {
      %cst_9 = arith.constant 0.000000e+00 : f32
      %15 = vector.broadcast %cst_9 : f32 to vector<200x64xf32>
      %c0_10 = arith.constant 0 : index
      %c0_11 = arith.constant 0 : index
      %16 = vector.load %arg7[%c0_10, %c0_11] : memref<200x64xf32, #tpu.memory_space<vmem>>, vector<200x64xf32>
      tpu.vector_store %arg7[%c0_10, %c0_11], %15 {strides = array<i32>} : memref<200x64xf32, #tpu.memory_space<vmem>>, vector<200x64xf32>,
    } else {
    }
    %c256_i32 = arith.constant 256 : i32
    %3 = arith.muli %arg1, %c256_i32 : i32
    %4 = tpu.assume_multiple %3, 256 : i32
    %5 = arith.index_cast %4 : i32 to index
    %c0 = arith.constant 0 : index
    %6 = vector.load %arg3[%5, %c0] : memref<256x64xbf16, #tpu.memory_space<vmem>>, vector<256x64xbf16>
    %c0_1 = arith.constant 0 : index
    %c0_2 = arith.constant 0 : index
    %7 = vector.load %arg7[%c0_1, %c0_2] : memref<200x64xf32, #tpu.memory_space<vmem>>, vector<200x64xf32>
    %c0_3 = arith.constant 0 : index
    %c0_4 = arith.constant 0 : index
    %8 = vector.load %arg2[%c0_3, %c0_4] : memref<200x256xbf16, #tpu.memory_space<vmem>>, vector<200x256xbf16>
    %cst = arith.constant dense<0.000000e+00> : vector<200x64xf32>
    %9 = tpu.matmul %8, %6, %cst {dimension_numbers = #tpu.dot_dimension_numbers<[1], [0], [0], [1], [0, 0, 1, 1], [], []>} : vector<200x256xbf16>, vector<256x64xbf16>, vector<200x64xf32> -> vector<200x64xf32>
    %10 = arith.addf %7, %9 : vector<200x64xf32>
    %c0_5 = arith.constant 0 : index
    %c0_6 = arith.constant 0 : index
    %11 = vector.load %arg7[%c0_5, %c0_6] : memref<200x64xf32, #tpu.memory_space<vmem>>, vector<200x64xf32>
    tpu.vector_store %arg7[%c0_5, %c0_6], %10 {strides = array<i32>} : memref<200x64xf32, #tpu.memory_space<vmem>>, vector<200x64xf32>,
    %c0_i32_7 = arith.constant 0 : i32
    %12 = arith.cmpi eq, %arg1, %c0_i32_7 : i32
    %13 = arith.extui %12 : i1 to i32
    %c0_i32_8 = arith.constant 0 : i32
    %14 = arith.cmpi ne, %13, %c0_i32_8 : i32
    scf.if %14 {
      %c0_9 = arith.constant 0 : index
      %c0_10 = arith.constant 0 : index
      %15 = memref.load %arg5[%c0_9, %c0_10] : memref<1x1xf32, #tpu.memory_space<smem>>
      %c0_11 = arith.constant 0 : index
      %c0_12 = arith.constant 0 : index
      %16 = vector.load %arg7[%c0_11, %c0_12] : memref<200x64xf32, #tpu.memory_space<vmem>>, vector<200x64xf32>
      %c0_13 = arith.constant 0 : index
      %c0_14 = arith.constant 0 : index
      %17 = vector.load %arg4[%c0_13, %c0_14] : memref<1x64xf32, #tpu.memory_space<vmem>>, vector<1x64xf32>
      %18 = vector.broadcast %17 : vector<1x64xf32> to vector<200x64xf32>
      %19 = arith.addf %16, %18 : vector<200x64xf32>
      %cst_15 = arith.constant 0.000000e+00 : f32
      %20 = vector.broadcast %cst_15 : f32 to vector<200x64xf32>
      %21 = arith.cmpf ogt, %19, %20 : vector<200x64xf32>
      %22 = vector.broadcast %15 : f32 to vector<200x64xf32>
      %23 = arith.mulf %22, %19 : vector<200x64xf32>
      %24 = arith.select %21, %19, %23 : vector<200x64xi1>, vector<200x64xf32>
      %c0_16 = arith.constant 0 : index
      %c0_17 = arith.constant 0 : index
      %25 = vector.load %arg7[%c0_16, %c0_17] : memref<200x64xf32, #tpu.memory_space<vmem>>, vector<200x64xf32>
      tpu.vector_store %arg7[%c0_16, %c0_17], %24 {strides = array<i32>} : memref<200x64xf32, #tpu.memory_space<vmem>>, vector<200x64xf32>,
      %c200_i32 = arith.constant 200 : i32
      %26 = arith.muli %arg0, %c200_i32 : i32
      %27 = tpu.iota {dimensions = array<i32: 0>} : vector<200x1xi32>
      %28 = vector.broadcast %26 : i32 to vector<200x1xi32>
      %29 = arith.addi %28, %27 : vector<200x1xi32>
      %c0_18 = arith.constant 0 : index
      %c0_19 = arith.constant 0 : index
      %30 = memref.load %arg6[%c0_18, %c0_19] : memref<1x1xi32, #tpu.memory_space<smem>>
      %31 = vector.broadcast %30 : i32 to vector<200x1xi32>
      %32 = arith.cmpi slt, %29, %31 : vector<200x1xi32>
      %cst_20 = arith.constant 0.000000e+00 : f32
      %33 = vector.shape_cast %32 : vector<200x1xi1> to vector<200x1xi1>
      %34 = vector.broadcast %33 : vector<200x1xi1> to vector<200x64xi1>
      %35 = vector.broadcast %cst_20 : f32 to vector<200x64xf32>
      %36 = arith.select %34, %24, %35 : vector<200x64xi1>, vector<200x64xf32>
      %cst_21 = arith.constant dense<0.000000e+00> : vector<64xf32>
      %37 = vector.multi_reduction <add>, %36, %cst_21 [0] : vector<200x64xf32> to vector<64xf32>
      %38 = vector.shape_cast %37 : vector<64xf32> to vector<1x64xf32>
      %39 = vector.shape_cast %38 : vector<1x64xf32> to vector<1x1x64xf32>
      %c0_22 = arith.constant 0 : index
      %c0_23 = arith.constant 0 : index
      %c0_24 = arith.constant 0 : index
      %40 = vector.load %arg8[%c0_22, %c0_23, %c0_24] : memref<1x1x64xf32, #tpu.memory_space<vmem>>, vector<1x1x64xf32>
      tpu.vector_store %arg8[%c0_22, %c0_23, %c0_24], %39 {strides = array<i32>} : memref<1x1x64xf32, #tpu.memory_space<vmem>>, vector<1x1x64xf32>,
    } else {
    }
    return
  }
  func.func @transform_0(%arg0: i32, %arg1: i32) -> (i32, i32) {
    %c0_i32 = arith.constant 0 : i32
    return %arg0, %arg1 : i32, i32
  }
  func.func @transform_1(%arg0: i32, %arg1: i32) -> (i32, i32) {
    %c0_i32 = arith.constant 0 : i32
    %c0_i32_0 = arith.constant 0 : i32
    %c0_i32_1 = arith.constant 0 : i32
    return %c0_i32, %c0_i32_0 : i32, i32
  }
  func.func @transform_2(%arg0: i32, %arg1: i32) -> (i32, i32) {
    %c0_i32 = arith.constant 0 : i32
    %c0_i32_0 = arith.constant 0 : i32
    %c0_i32_1 = arith.constant 0 : i32
    return %c0_i32, %c0_i32_0 : i32, i32
  }
  func.func @transform_3(%arg0: i32, %arg1: i32) -> (i32, i32) {
    %c0_i32 = arith.constant 0 : i32
    %c0_i32_0 = arith.constant 0 : i32
    %c0_i32_1 = arith.constant 0 : i32
    return %c0_i32, %c0_i32_0 : i32, i32
  }
  func.func @transform_4(%arg0: i32, %arg1: i32) -> (i32, i32) {
    %c0_i32 = arith.constant 0 : i32
    %c0_i32_0 = arith.constant 0 : i32
    %c0_i32_1 = arith.constant 0 : i32
    return %c0_i32, %c0_i32_0 : i32, i32
  }
  func.func @transform_5(%arg0: i32, %arg1: i32) -> (i32, i32) {
    %c0_i32 = arith.constant 0 : i32
    %c0_i32_0 = arith.constant 0 : i32
    return %arg0, %c0_i32 : i32, i32
  }
  func.func @transform_6(%arg0: i32, %arg1: i32) -> (i32, i32, i32) {
    %c0_i32 = arith.constant 0 : i32
    %c0_i32_0 = arith.constant 0 : i32
    %c0_i32_1 = arith.constant 0 : i32
    return %arg0, %c0_i32, %c0_i32_0 : i32, i32, i32
  }
}

module attributes {stable_mosaic.version = 11 : i64} {
  func.func @scores_kernel(%arg0: i32, %arg1: memref<200x64xf32, #tpu.memory_space<vmem>>, %arg2: memref<4x64xf32, #tpu.memory_space<vmem>>, %arg3: memref<4x1xf32, #tpu.memory_space<vmem>>, %arg4: memref<4x200xf32, #tpu.memory_space<vmem>>) attributes {dimension_semantics = [#tpu.dimension_semantics<parallel>], iteration_bounds = array<i64: 1>, scalar_prefetch = 0 : i64, scratch_operands = 0 : i64, tpu.core_type = #tpu.core_type<tc>, window_params = [{transform_indices = @transform_0, window_bounds = array<i64: 200, 64>}, {pipeline_mode = #tpu.pipeline_mode<synchronous>, transform_indices = @transform_1, window_bounds = array<i64: 4, 64>}, {pipeline_mode = #tpu.pipeline_mode<synchronous>, transform_indices = @transform_2, window_bounds = array<i64: 4, 1>}, {transform_indices = @transform_3, window_bounds = array<i64: 4, 200>}]} {
    %c0 = arith.constant 0 : index
    %c0_0 = arith.constant 0 : index
    %0 = vector.load %arg2[%c0, %c0_0] : memref<4x64xf32, #tpu.memory_space<vmem>>, vector<4x64xf32>
    %c0_1 = arith.constant 0 : index
    %c0_2 = arith.constant 0 : index
    %1 = vector.load %arg1[%c0_1, %c0_2] : memref<200x64xf32, #tpu.memory_space<vmem>>, vector<200x64xf32>
    %cst = arith.constant dense<0.000000e+00> : vector<4x200xf32>
    %2 = tpu.matmul %0, %1, %cst {dimension_numbers = #tpu.dot_dimension_numbers<[1], [1], [0], [0], [0, 0, 1, 0], [], []>} : vector<4x64xf32>, vector<200x64xf32>, vector<4x200xf32> -> vector<4x200xf32>
    %c0_3 = arith.constant 0 : index
    %c0_4 = arith.constant 0 : index
    %3 = vector.load %arg3[%c0_3, %c0_4] : memref<4x1xf32, #tpu.memory_space<vmem>>, vector<4x1xf32>
    %4 = vector.broadcast %3 : vector<4x1xf32> to vector<4x200xf32>
    %5 = arith.addf %2, %4 : vector<4x200xf32>
    %c0_5 = arith.constant 0 : index
    %c0_6 = arith.constant 0 : index
    %6 = vector.load %arg4[%c0_5, %c0_6] : memref<4x200xf32, #tpu.memory_space<vmem>>, vector<4x200xf32>
    tpu.vector_store %arg4[%c0_5, %c0_6], %5 {strides = array<i32>} : memref<4x200xf32, #tpu.memory_space<vmem>>, vector<4x200xf32>,
    return
  }
  func.func @transform_0(%arg0: i32) -> (i32, i32) {
    %c0_i32 = arith.constant 0 : i32
    %c0_i32_0 = arith.constant 0 : i32
    return %arg0, %c0_i32 : i32, i32
  }
  func.func @transform_1(%arg0: i32) -> (i32, i32) {
    %c0_i32 = arith.constant 0 : i32
    %c0_i32_0 = arith.constant 0 : i32
    %c0_i32_1 = arith.constant 0 : i32
    return %c0_i32, %c0_i32_0 : i32, i32
  }
  func.func @transform_2(%arg0: i32) -> (i32, i32) {
    %c0_i32 = arith.constant 0 : i32
    %c0_i32_0 = arith.constant 0 : i32
    %c0_i32_1 = arith.constant 0 : i32
    return %c0_i32, %c0_i32_0 : i32, i32
  }
  func.func @transform_3(%arg0: i32) -> (i32, i32) {
    %c0_i32 = arith.constant 0 : i32
    %c0_i32_0 = arith.constant 0 : i32
    return %c0_i32, %arg0 : i32, i32
  }
}

</mosaic_0001>

<llo_original>
// kernel: tile.8
$region0: #{tile.8}
  #allocation0 [shape = 's32[1]{0}', space=sflag, size = 0x4, scoped, tag = 'scoped memory for tile.8']
  %s0 = inlined_call_operand.vmem [shape: f32[2], index: 0, kind: input, shape index: {}]
  %s1 = inlined_call_operand.vmem [shape: f32[2,1,1,2], index: 1, kind: output, shape index: {}]
  // Predicated region
  $region2: #{tile.8} parent=0 // pred_check
    _
  $region3: #{tile.8} parent=0 // pred_check_branch
    %3 = sbr.rel (0) target = $region5
  $region4: #{tile.8} parent=0 // pred_region
    _
  $region5: #{tile.8} parent=0 // pred_fallthru
    _
  %v4 = vld [vmem:[%s0] ss:$0 sm:$0xff]
  %5 = vst [vmem:[%s1] sm:$0x3] %v4

// kernel: tile.0
$region0: #{tile.0}
  %s0 = inlined_call_operand.vmem [shape: f32[2,1,1,2], index: 0, kind: input, shape index: {}]
  %s1 = inlined_call_operand.vmem [shape: f32[4,1], index: 1, kind: output, shape index: {}]
  $region1: #{tile.0} parent=0
    #allocation0 [shape = 'u8[4096]{0}', space=vmem, size = 0x1000, scoped, tag = 'scoped mem for output reshape']
    #allocation1 [shape = 'u8[4096]{0}', space=vmem, size = 0x1000, scoped, tag = 'scoped mem for input reshape']
    %s3 = ssub.s32 4, 1
    %v4 = vld [vmem:[%s0] sm:%s3]
    %5 = vst [vmem:[#allocation1] sm:%s3] %v4
    %v6 = vld [vmem:[#allocation1] sm:$0x3]
    %vm7 = vcmask 7168
    %8 = vst.msk [vmem:[#allocation0] ss:$2 sm:$0x3] %vm7, %v6
    %v9 = vld [vmem:[#allocation1] sm:$0x3]
    %10 = vrot.lane.b32.xlu0 %v9, 127
    %v11 = vpop.permute.xlu0 %10
    %vm12 = vcmask 7168
    %s13 = scalar_lea.vmem [#allocation0], 1
    %14 = vst.msk [vmem:[%s13] ss:$2 sm:$0x3] %vm12, %v11
    %s16 = ssub.s32 16, 1
    %v17 = vld [vmem:[#allocation0] sm:%s16]
    %s19 = ssub.s32 16, 1
    %20 = vst [vmem:[%s1] sm:%s19] %v17

// kernel: dgi_forward.5
$region0: #{dgi_forward.5}
  #allocation0 [shape = 'u32[]', space=smem, size = 0x4, offset = 0x4, fixed_abs, tag = 'smem constant byte address 0x4 - core index']
  #allocation1 [shape = 'u32[72,128]{1,0:T(1,128)}', space=vmem, size = 0x9000, scoped, tag = 'internal scratch']
  %s0 = inlined_call_operand.vmem [shape: f32[200,64], index: 0, kind: input, shape index: {}]
  %s1 = inlined_call_operand.vmem [shape: f32[4,64], index: 1, kind: input, shape index: {}]
  %s2 = inlined_call_operand.vmem [shape: f32[4,1], index: 2, kind: input, shape index: {}]
  %s3 = inlined_call_operand.vmem [shape: f32[4,200], index: 3, kind: output, shape index: {}]
  %s4 = sld [smem:[#allocation0]]
  $region22: #{dgi_forward.5} parent=0
    _
  %s6 = ssub.s32 1, %s4
  %s7 = scalar_select 0, %s6, %s4
  // Predicated region
  $region2: #{dgi_forward.5} parent=0 // pred_check
    _
  $region3: #{dgi_forward.5} parent=0 // pred_check_branch
    %9 = sbr.rel (0) target = $region5
  $region4: #{dgi_forward.5} parent=0 // pred_region
    _
  $region5: #{dgi_forward.5} parent=0 // pred_fallthru
    _
  // Predicated region
  $region6: #{dgi_forward.5} parent=0 // pred_check
    _
  $region7: #{dgi_forward.5} parent=0 // pred_check_branch
    %11 = sbr.rel (0) target = $region9
  $region8: #{dgi_forward.5} parent=0 // pred_region
    _
  $region9: #{dgi_forward.5} parent=0 // pred_fallthru
    _
  // Predicated region
  $region10: #{dgi_forward.5} parent=0 // pred_check
    _
  $region11: #{dgi_forward.5} parent=0 // pred_check_branch
    %13 = sbr.rel (0) target = $region13
  $region12: #{dgi_forward.5} parent=0 // pred_region
    _
  $region13: #{dgi_forward.5} parent=0 // pred_fallthru
    _
  %v14 = vld [vmem:[%s1] sm:$0xf]
  %v15 = vld [vmem:[%s0] sm:$0xff]
  %v16 = vld [vmem:[%s0 + $0x8] sm:$0xff]
  %v17 = vld [vmem:[%s0 + $0x10] sm:$0xff]
  %v18 = vld [vmem:[%s0 + $0x18] sm:$0xff]
  %v19 = vld [vmem:[%s0 + $0x20] sm:$0xff]
  %v20 = vld [vmem:[%s0 + $0x28] sm:$0xff]
  %v21 = vld [vmem:[%s0 + $0x30] sm:$0xff]
  %v22 = vld [vmem:[%s0 + $0x38] sm:$0xff]
  %v23 = vld [vmem:[%s0 + $0x40] sm:$0xff]
  %v24 = vld [vmem:[%s0 + $0x48] sm:$0xff]
  %v25 = vld [vmem:[%s0 + $0x50] sm:$0xff]
  %v26 = vld [vmem:[%s0 + $0x58] sm:$0xff]
  %v27 = vld [vmem:[%s0 + $0x60] sm:$0xff]
  %v28 = vld [vmem:[%s0 + $0x68] sm:$0xff]
  %v29 = vld [vmem:[%s0 + $0x70] sm:$0xff]
  %v30 = vld [vmem:[%s0 + $0x78] sm:$0xff]
  %v31 = vld [vmem:[%s0 + $0x80] sm:$0xff]
  %v32 = vld [vmem:[%s0 + $0x88] sm:$0xff]
  %v33 = vld [vmem:[%s0 + $0x90] sm:$0xff]
  %v34 = vld [vmem:[%s0 + $0x98] sm:$0xff]
  %v35 = vld [vmem:[%s0 + $0xa0] sm:$0xff]
  %v36 = vld [vmem:[%s0 + $0xa8] sm:$0xff]
  %v37 = vld [vmem:[%s0 + $0xb0] sm:$0xff]
  %v38 = vld [vmem:[%s0 + $0xb8] sm:$0xff]
  %v39 = vld [vmem:[%s0 + $0xc0] sm:$0xff]
  %v40 = vld [vmem:[%s2] sm:$0xf]
  %42 = vset.pattern.permute.xlu0 0
  %43 = vperm.xlu0 %42, %v40
  %v44 = vpop.permute.xlu0 %43
  %vm46 = vcmask 523264
  %v48 = vsel %vm46, %v14, 0
  %v51 = vsel %vm46, %v15, 0
  %v54 = vsel %vm46, %v16, 0
  %v57 = vsel %vm46, %v17, 0
  %v60 = vsel %vm46, %v18, 0
  %v63 = vsel %vm46, %v19, 0
  %v66 = vsel %vm46, %v20, 0
  %v69 = vsel %vm46, %v21, 0
  %v72 = vsel %vm46, %v22, 0
  %v75 = vsel %vm46, %v23, 0
  %v78 = vsel %vm46, %v24, 0
  %v81 = vsel %vm46, %v25, 0
  %v84 = vsel %vm46, %v26, 0
  %v87 = vsel %vm46, %v27, 0
  %v90 = vsel %vm46, %v28, 0
  %v93 = vsel %vm46, %v29, 0
  %v96 = vsel %vm46, %v30, 0
  %v99 = vsel %vm46, %v31, 0
  %v102 = vsel %vm46, %v32, 0
  %v105 = vsel %vm46, %v33, 0
  %v108 = vsel %vm46, %v34, 0
  %v111 = vsel %vm46, %v35, 0
  %v114 = vsel %vm46, %v36, 0
  %v117 = vsel %vm46, %v37, 0
  %v120 = vsel %vm46, %v38, 0
  %v123 = vsel %vm46, %v39, 0
  %125 = vmatpush.xpose.msra.mxu0 %v96
  %126 = vmatpush.xpose.msra.mxu0 %v93
  %127 = vmatpush.xpose.msra.mxu0 %v90
  %128 = vmatpush.xpose.msra.mxu0 %v87
  %129 = vmatpush.xpose.msra.mxu0 %v84
  %130 = vmatpush.xpose.msra.mxu0 %v81
  %131 = vmatpush.xpose.msra.mxu0 %v78
  %132 = vmatpush.xpose.msra.mxu0 %v75
  %133 = vmatpush.xpose.msra.mxu0 %v72
  %134 = vmatpush.xpose.msra.mxu0 %v69
  %135 = vmatpush.xpose.msra.mxu0 %v66
  %136 = vmatpush.xpose.msra.mxu0 %v63
  %137 = vmatpush.xpose.msra.mxu0 %v60
  %138 = vmatpush.xpose.msra.mxu0 %v57
  %139 = vmatpush.xpose.msra.mxu0 %v54
  %140 = vmatpush.xpose.msra.mxu0 %v51
  %141 = vmatmul.f32.gmra.mxu0 %v48
  %v142 = vpop.f32.mrf.mxu0
  %v143 = vadd.f32 %v44, %v142
  %144 = vdwg.mxu0
  %145 = vmatpush.xpose.msra.mxu0 0.0
  %146 = vmatpush.xpose.msra.mxu0 0.0
  %147 = vmatpush.xpose.msra.mxu0 0.0
  %148 = vmatpush.xpose.msra.mxu0 0.0
  %149 = vmatpush.xpose.msra.mxu0 0.0
  %150 = vmatpush.xpose.msra.mxu0 0.0
  %151 = vmatpush.xpose.msra.mxu0 0.0
  %152 = vmatpush.xpose.msra.mxu0 %v123
  %153 = vmatpush.xpose.msra.mxu0 %v120
  %154 = vmatpush.xpose.msra.mxu0 %v117
  %155 = vmatpush.xpose.msra.mxu0 %v114
  %156 = vmatpush.xpose.msra.mxu0 %v111
  %157 = vmatpush.xpose.msra.mxu0 %v108
  %158 = vmatpush.xpose.msra.mxu0 %v105
  %159 = vmatpush.xpose.msra.mxu0 %v102
  %160 = vmatpush.xpose.msra.mxu0 %v99
  %161 = vmatmul.f32.gmra.mxu0 %v48
  %v162 = vpop.f32.mrf.mxu0
  %v163 = vadd.f32 %v44, %v162
  %164 = vdwg.mxu0
  %v167 = vrot.slane %v163, 4
  %vm168 = vcmask 1043456
  %v169 = vsel %vm168, %v143, %v167
  %vm171 = vcmask 588804
  %vm172 = vmor %vm171, %vm168
  %173 = vst.msk [vmem:[%s3] sm:$0xff] %vm172, %v169
  // Predicated region
  $region14: #{dgi_forward.5} parent=0 // pred_check
    _
  $region15: #{dgi_forward.5} parent=0 // pred_check_branch
    %175 = sbr.rel (0) target = $region17
  $region16: #{dgi_forward.5} parent=0 // pred_region
    _
  $region17: #{dgi_forward.5} parent=0 // pred_fallthru
    _
  // Predicated region
  $region18: #{dgi_forward.5} parent=0 // pred_check
    _
  $region19: #{dgi_forward.5} parent=0 // pred_check_branch
    %177 = sbr.rel (0) target = $region21
  $region20: #{dgi_forward.5} parent=0 // pred_region
    _
  $region21: #{dgi_forward.5} parent=0 // pred_fallthru
    _

// kernel: dgi_forward.3
$region0: #{dgi_forward.3}
  #allocation0 [shape = 'u32[]', space=smem, size = 0x4, offset = 0x4, fixed_abs, tag = 'smem constant byte address 0x4 - core index']
  #allocation1 [shape = 'u32[72,128]{1,0:T(1,128)}', space=vmem, size = 0x9000, scoped, tag = 'internal scratch']
  %s0 = inlined_call_operand.vmem [shape: f32[256,48], index: 0, kind: input, shape index: {}]
  %s1 = inlined_call_operand.vmem [shape: f32[256,48], index: 1, kind: input, shape index: {}]
  %s2 = inlined_call_operand.vmem [shape: f32[48,32], index: 2, kind: input, shape index: {}]
  %s3 = inlined_call_operand.vmem [shape: bf16[256,64], index: 3, kind: output, shape index: {}]
  %s4 = sld [smem:[#allocation0]]
  $region22: #{dgi_forward.3} parent=0
    _
  %s6 = ssub.s32 1, %s4
  %s7 = scalar_select 0, %s6, %s4
  // Predicated region
  $region2: #{dgi_forward.3} parent=0 // pred_check
    _
  $region3: #{dgi_forward.3} parent=0 // pred_check_branch
    %9 = sbr.rel (0) target = $region5
  $region4: #{dgi_forward.3} parent=0 // pred_region
    _
  $region5: #{dgi_forward.3} parent=0 // pred_fallthru
    _
  // Predicated region
  $region6: #{dgi_forward.3} parent=0 // pred_check
    _
  $region7: #{dgi_forward.3} parent=0 // pred_check_branch
    %11 = sbr.rel (0) target = $region9
  $region8: #{dgi_forward.3} parent=0 // pred_region
    _
  $region9: #{dgi_forward.3} parent=0 // pred_fallthru
    _
  // Predicated region
  $region10: #{dgi_forward.3} parent=0 // pred_check
    _
  $region11: #{dgi_forward.3} parent=0 // pred_check_branch
    %13 = sbr.rel (0) target = $region13
  $region12: #{dgi_forward.3} parent=0 // pred_region
    _
  $region13: #{dgi_forward.3} parent=0 // pred_fallthru
    _
  %v14 = vld [vmem:[%s2] sm:$0xff]
  %v15 = vld [vmem:[%s2 + $0x8] sm:$0xff]
  %v16 = vld [vmem:[%s2 + $0x10] sm:$0xff]
  %v17 = vld [vmem:[%s2 + $0x18] sm:$0xff]
  %v18 = vld [vmem:[%s2 + $0x20] sm:$0xff]
  %v19 = vld [vmem:[%s2 + $0x28] sm:$0xff]
  %v20 = vld [vmem:[%s0] sm:$0xff]
  %v21 = vld [vmem:[%s0 + $0x8] sm:$0xff]
  %v22 = vld [vmem:[%s0 + $0x10] sm:$0xff]
  %v23 = vld [vmem:[%s0 + $0x18] sm:$0xff]
  %v24 = vld [vmem:[%s0 + $0x20] sm:$0xff]
  %v25 = vld [vmem:[%s0 + $0x28] sm:$0xff]
  %v26 = vld [vmem:[%s0 + $0x30] sm:$0xff]
  %v27 = vld [vmem:[%s0 + $0x38] sm:$0xff]
  %v28 = vld [vmem:[%s0 + $0x40] sm:$0xff]
  %v29 = vld [vmem:[%s0 + $0x48] sm:$0xff]
  %v30 = vld [vmem:[%s0 + $0x50] sm:$0xff]
  %v31 = vld [vmem:[%s0 + $0x58] sm:$0xff]
  %v32 = vld [vmem:[%s0 + $0x60] sm:$0xff]
  %v33 = vld [vmem:[%s0 + $0x68] sm:$0xff]
  %v34 = vld [vmem:[%s0 + $0x70] sm:$0xff]
  %v35 = vld [vmem:[%s0 + $0x78] sm:$0xff]
  %v36 = vld [vmem:[%s0 + $0x80] sm:$0xff]
  %v37 = vld [vmem:[%s0 + $0x88] sm:$0xff]
  %v38 = vld [vmem:[%s0 + $0x90] sm:$0xff]
  %v39 = vld [vmem:[%s0 + $0x98] sm:$0xff]
  %v40 = vld [vmem:[%s0 + $0xa0] sm:$0xff]
  %v41 = vld [vmem:[%s0 + $0xa8] sm:$0xff]
  %v42 = vld [vmem:[%s0 + $0xb0] sm:$0xff]
  %v43 = vld [vmem:[%s0 + $0xb8] sm:$0xff]
  %v44 = vld [vmem:[%s0 + $0xc0] sm:$0xff]
  %v45 = vld [vmem:[%s0 + $0xc8] sm:$0xff]
  %v46 = vld [vmem:[%s0 + $0xd0] sm:$0xff]
  %v47 = vld [vmem:[%s0 + $0xd8] sm:$0xff]
  %v48 = vld [vmem:[%s0 + $0xe0] sm:$0xff]
  %v49 = vld [vmem:[%s0 + $0xe8] sm:$0xff]
  %v50 = vld [vmem:[%s0 + $0xf0] sm:$0xff]
  %v51 = vld [vmem:[%s0 + $0xf8] sm:$0xff]
  %vm52 = vcmask 392192
  %v54 = vsel %vm52, %v20, 0
  %v57 = vsel %vm52, %v21, 0
  %v60 = vsel %vm52, %v22, 0
  %v63 = vsel %vm52, %v23, 0
  %v66 = vsel %vm52, %v24, 0
  %v69 = vsel %vm52, %v25, 0
  %v72 = vsel %vm52, %v26, 0
  %v75 = vsel %vm52, %v27, 0
  %v78 = vsel %vm52, %v28, 0
  %v81 = vsel %vm52, %v29, 0
  %v84 = vsel %vm52, %v30, 0
  %v87 = vsel %vm52, %v31, 0
  %v90 = vsel %vm52, %v32, 0
  %v93 = vsel %vm52, %v33, 0
  %v96 = vsel %vm52, %v34, 0
  %v99 = vsel %vm52, %v35, 0
  %v102 = vsel %vm52, %v36, 0
  %v105 = vsel %vm52, %v37, 0
  %v108 = vsel %vm52, %v38, 0
  %v111 = vsel %vm52, %v39, 0
  %v114 = vsel %vm52, %v40, 0
  %v117 = vsel %vm52, %v41, 0
  %v120 = vsel %vm52, %v42, 0
  %v123 = vsel %vm52, %v43, 0
  %v126 = vsel %vm52, %v44, 0
  %v129 = vsel %vm52, %v45, 0
  %v132 = vsel %vm52, %v46, 0
  %v135 = vsel %vm52, %v47, 0
  %v138 = vsel %vm52, %v48, 0
  %v141 = vsel %vm52, %v49, 0
  %v144 = vsel %vm52, %v50, 0
  %v147 = vsel %vm52, %v51, 0
  %149 = vmatpush.msra.mxu0 0.0
  %150 = vmatpush.msra.mxu0 0.0
  %151 = vmatpush.msra.mxu0 0.0
  %152 = vmatpush.msra.mxu0 0.0
  %153 = vmatpush.msra.mxu0 0.0
  %154 = vmatpush.msra.mxu0 0.0
  %155 = vmatpush.msra.mxu0 0.0
  %156 = vmatpush.msra.mxu0 0.0
  %157 = vmatpush.msra.mxu0 0.0
  %158 = vmatpush.msra.mxu0 0.0
  %159 = vmatpush.msra.mxu0 %v19
  %160 = vmatpush.msra.mxu0 %v18
  %161 = vmatpush.msra.mxu0 %v17
  %162 = vmatpush.msra.mxu0 %v16
  %163 = vmatpush.msra.mxu0 %v15
  %164 = vmatpush.msra.mxu0 %v14
  %165 = vmatmul.f32.gmra.mxu0 %v54
  %v166 = vpop.f32.mrf.mxu0
  %v167 = vadd.f32 0.0, %v166
  %168 = vmatmul.f32.gmra.mxu0 %v57
  %v169 = vpop.f32.mrf.mxu0
  %v170 = vadd.f32 0.0, %v169
  %171 = vmatmul.f32.gmra.mxu0 %v60
  %v172 = vpop.f32.mrf.mxu0
  %v173 = vadd.f32 0.0, %v172
  %174 = vmatmul.f32.gmra.mxu0 %v63
  %v175 = vpop.f32.mrf.mxu0
  %v176 = vadd.f32 0.0, %v175
  %177 = vmatmul.f32.gmra.mxu0 %v66
  %v178 = vpop.f32.mrf.mxu0
  %v179 = vadd.f32 0.0, %v178
  %180 = vmatmul.f32.gmra.mxu0 %v69
  %v181 = vpop.f32.mrf.mxu0
  %v182 = vadd.f32 0.0, %v181
  %183 = vmatmul.f32.gmra.mxu0 %v72
  %v184 = vpop.f32.mrf.mxu0
  %v185 = vadd.f32 0.0, %v184
  %186 = vmatmul.f32.gmra.mxu0 %v75
  %v187 = vpop.f32.mrf.mxu0
  %v188 = vadd.f32 0.0, %v187
  %189 = vmatmul.f32.gmra.mxu0 %v78
  %v190 = vpop.f32.mrf.mxu0
  %v191 = vadd.f32 0.0, %v190
  %192 = vmatmul.f32.gmra.mxu0 %v81
  %v193 = vpop.f32.mrf.mxu0
  %v194 = vadd.f32 0.0, %v193
  %195 = vmatmul.f32.gmra.mxu0 %v84
  %v196 = vpop.f32.mrf.mxu0
  %v197 = vadd.f32 0.0, %v196
  %198 = vmatmul.f32.gmra.mxu0 %v87
  %v199 = vpop.f32.mrf.mxu0
  %v200 = vadd.f32 0.0, %v199
  %201 = vmatmul.f32.gmra.mxu0 %v90
  %v202 = vpop.f32.mrf.mxu0
  %v203 = vadd.f32 0.0, %v202
  %204 = vmatmul.f32.gmra.mxu0 %v93
  %v205 = vpop.f32.mrf.mxu0
  %v206 = vadd.f32 0.0, %v205
  %207 = vmatmul.f32.gmra.mxu0 %v96
  %v208 = vpop.f32.mrf.mxu0
  %v209 = vadd.f32 0.0, %v208
  %210 = vmatmul.f32.gmra.mxu0 %v99
  %v211 = vpop.f32.mrf.mxu0
  %v212 = vadd.f32 0.0, %v211
  %213 = vmatmul.f32.gmra.mxu0 %v102
  %v214 = vpop.f32.mrf.mxu0
  %v215 = vadd.f32 0.0, %v214
  %216 = vmatmul.f32.gmra.mxu0 %v105
  %v217 = vpop.f32.mrf.mxu0
  %v218 = vadd.f32 0.0, %v217
  %219 = vmatmul.f32.gmra.mxu0 %v108
  %v220 = vpop.f32.mrf.mxu0
  %v221 = vadd.f32 0.0, %v220
  %222 = vmatmul.f32.gmra.mxu0 %v111
  %v223 = vpop.f32.mrf.mxu0
  %v224 = vadd.f32 0.0, %v223
  %225 = vmatmul.f32.gmra.mxu0 %v114
  %v226 = vpop.f32.mrf.mxu0
  %v227 = vadd.f32 0.0, %v226
  %228 = vmatmul.f32.gmra.mxu0 %v117
  %v229 = vpop.f32.mrf.mxu0
  %v230 = vadd.f32 0.0, %v229
  %231 = vmatmul.f32.gmra.mxu0 %v120
  %v232 = vpop.f32.mrf.mxu0
  %v233 = vadd.f32 0.0, %v232
  %234 = vmatmul.f32.gmra.mxu0 %v123
  %v235 = vpop.f32.mrf.mxu0
  %v236 = vadd.f32 0.0, %v235
  %237 = vmatmul.f32.gmra.mxu0 %v126
  %v238 = vpop.f32.mrf.mxu0
  %v239 = vadd.f32 0.0, %v238
  %240 = vmatmul.f32.gmra.mxu0 %v129
  %v241 = vpop.f32.mrf.mxu0
  %v242 = vadd.f32 0.0, %v241
  %243 = vmatmul.f32.gmra.mxu0 %v132
  %v244 = vpop.f32.mrf.mxu0
  %v245 = vadd.f32 0.0, %v244
  %246 = vmatmul.f32.gmra.mxu0 %v135
  %v247 = vpop.f32.mrf.mxu0
  %v248 = vadd.f32 0.0, %v247
  %249 = vmatmul.f32.gmra.mxu0 %v138
  %v250 = vpop.f32.mrf.mxu0
  %v251 = vadd.f32 0.0, %v250
  %252 = vmatmul.f32.gmra.mxu0 %v141
  %v253 = vpop.f32.mrf.mxu0
  %v254 = vadd.f32 0.0, %v253
  %255 = vmatmul.f32.gmra.mxu0 %v144
  %v256 = vpop.f32.mrf.mxu0
  %v257 = vadd.f32 0.0, %v256
  %258 = vmatmul.f32.gmra.mxu0 %v147
  %v259 = vpop.f32.mrf.mxu0
  %v260 = vadd.f32 0.0, %v259
  %261 = vdwg.mxu0
  %v262 = vld [vmem:[%s1] sm:$0xff]
  %v263 = vld [vmem:[%s1 + $0x8] sm:$0xff]
  %v264 = vld [vmem:[%s1 + $0x10] sm:$0xff]
  %v265 = vld [vmem:[%s1 + $0x18] sm:$0xff]
  %v266 = vld [vmem:[%s1 + $0x20] sm:$0xff]
  %v267 = vld [vmem:[%s1 + $0x28] sm:$0xff]
  %v268 = vld [vmem:[%s1 + $0x30] sm:$0xff]
  %v269 = vld [vmem:[%s1 + $0x38] sm:$0xff]
  %v270 = vld [vmem:[%s1 + $0x40] sm:$0xff]
  %v271 = vld [vmem:[%s1 + $0x48] sm:$0xff]
  %v272 = vld [vmem:[%s1 + $0x50] sm:$0xff]
  %v273 = vld [vmem:[%s1 + $0x58] sm:$0xff]
  %v274 = vld [vmem:[%s1 + $0x60] sm:$0xff]
  %v275 = vld [vmem:[%s1 + $0x68] sm:$0xff]
  %v276 = vld [vmem:[%s1 + $0x70] sm:$0xff]
  %v277 = vld [vmem:[%s1 + $0x78] sm:$0xff]
  %v278 = vld [vmem:[%s1 + $0x80] sm:$0xff]
  %v279 = vld [vmem:[%s1 + $0x88] sm:$0xff]
  %v280 = vld [vmem:[%s1 + $0x90] sm:$0xff]
  %v281 = vld [vmem:[%s1 + $0x98] sm:$0xff]
  %v282 = vld [vmem:[%s1 + $0xa0] sm:$0xff]
  %v283 = vld [vmem:[%s1 + $0xa8] sm:$0xff]
  %v284 = vld [vmem:[%s1 + $0xb0] sm:$0xff]
  %v285 = vld [vmem:[%s1 + $0xb8] sm:$0xff]
  %v286 = vld [vmem:[%s1 + $0xc0] sm:$0xff]
  %v287 = vld [vmem:[%s1 + $0xc8] sm:$0xff]
  %v288 = vld [vmem:[%s1 + $0xd0] sm:$0xff]
  %v289 = vld [vmem:[%s1 + $0xd8] sm:$0xff]
  %v290 = vld [vmem:[%s1 + $0xe0] sm:$0xff]
  %v291 = vld [vmem:[%s1 + $0xe8] sm:$0xff]
  %v292 = vld [vmem:[%s1 + $0xf0] sm:$0xff]
  %v293 = vld [vmem:[%s1 + $0xf8] sm:$0xff]
  %v295 = vsel %vm52, %v262, 0
  %v298 = vsel %vm52, %v263, 0
  %v301 = vsel %vm52, %v264, 0
  %v304 = vsel %vm52, %v265, 0
  %v307 = vsel %vm52, %v266, 0
  %v310 = vsel %vm52, %v267, 0
  %v313 = vsel %vm52, %v268, 0
  %v316 = vsel %vm52, %v269, 0
  %v319 = vsel %vm52, %v270, 0
  %v322 = vsel %vm52, %v271, 0
  %v325 = vsel %vm52, %v272, 0
  %v328 = vsel %vm52, %v273, 0
  %v331 = vsel %vm52, %v274, 0
  %v334 = vsel %vm52, %v275, 0
  %v337 = vsel %vm52, %v276, 0
  %v340 = vsel %vm52, %v277, 0
  %v343 = vsel %vm52, %v278, 0
  %v346 = vsel %vm52, %v279, 0
  %v349 = vsel %vm52, %v280, 0
  %v352 = vsel %vm52, %v281, 0
  %v355 = vsel %vm52, %v282, 0
  %v358 = vsel %vm52, %v283, 0
  %v361 = vsel %vm52, %v284, 0
  %v364 = vsel %vm52, %v285, 0
  %v367 = vsel %vm52, %v286, 0
  %v370 = vsel %vm52, %v287, 0
  %v373 = vsel %vm52, %v288, 0
  %v376 = vsel %vm52, %v289, 0
  %v379 = vsel %vm52, %v290, 0
  %v382 = vsel %vm52, %v291, 0
  %v385 = vsel %vm52, %v292, 0
  %v388 = vsel %vm52, %v293, 0
  %390 = vmatpush.msra.mxu0 0.0
  %391 = vmatpush.msra.mxu0 0.0
  %392 = vmatpush.msra.mxu0 0.0
  %393 = vmatpush.msra.mxu0 0.0
  %394 = vmatpush.msra.mxu0 0.0
  %395 = vmatpush.msra.mxu0 0.0
  %396 = vmatpush.msra.mxu0 0.0
  %397 = vmatpush.msra.mxu0 0.0
  %398 = vmatpush.msra.mxu0 0.0
  %399 = vmatpush.msra.mxu0 0.0
  %400 = vmatpush.msra.mxu0 %v19
  %401 = vmatpush.msra.mxu0 %v18
  %402 = vmatpush.msra.mxu0 %v17
  %403 = vmatpush.msra.mxu0 %v16
  %404 = vmatpush.msra.mxu0 %v15
  %405 = vmatpush.msra.mxu0 %v14
  %406 = vmatmul.f32.gmra.mxu0 %v295
  %v407 = vpop.f32.mrf.mxu0
  %v408 = vadd.f32 0.0, %v407
  %409 = vmatmul.f32.gmra.mxu0 %v298
  %v410 = vpop.f32.mrf.mxu0
  %v411 = vadd.f32 0.0, %v410
  %412 = vmatmul.f32.gmra.mxu0 %v301
  %v413 = vpop.f32.mrf.mxu0
  %v414 = vadd.f32 0.0, %v413
  %415 = vmatmul.f32.gmra.mxu0 %v304
  %v416 = vpop.f32.mrf.mxu0
  %v417 = vadd.f32 0.0, %v416
  %418 = vmatmul.f32.gmra.mxu0 %v307
  %v419 = vpop.f32.mrf.mxu0
  %v420 = vadd.f32 0.0, %v419
  %421 = vmatmul.f32.gmra.mxu0 %v310
  %v422 = vpop.f32.mrf.mxu0
  %v423 = vadd.f32 0.0, %v422
  %424 = vmatmul.f32.gmra.mxu0 %v313
  %v425 = vpop.f32.mrf.mxu0
  %v426 = vadd.f32 0.0, %v425
  %427 = vmatmul.f32.gmra.mxu0 %v316
  %v428 = vpop.f32.mrf.mxu0
  %v429 = vadd.f32 0.0, %v428
  %430 = vmatmul.f32.gmra.mxu0 %v319
  %v431 = vpop.f32.mrf.mxu0
  %v432 = vadd.f32 0.0, %v431
  %433 = vmatmul.f32.gmra.mxu0 %v322
  %v434 = vpop.f32.mrf.mxu0
  %v435 = vadd.f32 0.0, %v434
  %436 = vmatmul.f32.gmra.mxu0 %v325
  %v437 = vpop.f32.mrf.mxu0
  %v438 = vadd.f32 0.0, %v437
  %439 = vmatmul.f32.gmra.mxu0 %v328
  %v440 = vpop.f32.mrf.mxu0
  %v441 = vadd.f32 0.0, %v440
  %442 = vmatmul.f32.gmra.mxu0 %v331
  %v443 = vpop.f32.mrf.mxu0
  %v444 = vadd.f32 0.0, %v443
  %445 = vmatmul.f32.gmra.mxu0 %v334
  %v446 = vpop.f32.mrf.mxu0
  %v447 = vadd.f32 0.0, %v446
  %448 = vmatmul.f32.gmra.mxu0 %v337
  %v449 = vpop.f32.mrf.mxu0
  %v450 = vadd.f32 0.0, %v449
  %451 = vmatmul.f32.gmra.mxu0 %v340
  %v452 = vpop.f32.mrf.mxu0
  %v453 = vadd.f32 0.0, %v452
  %454 = vmatmul.f32.gmra.mxu0 %v343
  %v455 = vpop.f32.mrf.mxu0
  %v456 = vadd.f32 0.0, %v455
  %457 = vmatmul.f32.gmra.mxu0 %v346
  %v458 = vpop.f32.mrf.mxu0
  %v459 = vadd.f32 0.0, %v458
  %460 = vmatmul.f32.gmra.mxu0 %v349
  %v461 = vpop.f32.mrf.mxu0
  %v462 = vadd.f32 0.0, %v461
  %463 = vmatmul.f32.gmra.mxu0 %v352
  %v464 = vpop.f32.mrf.mxu0
  %v465 = vadd.f32 0.0, %v464
  %466 = vmatmul.f32.gmra.mxu0 %v355
  %v467 = vpop.f32.mrf.mxu0
  %v468 = vadd.f32 0.0, %v467
  %469 = vmatmul.f32.gmra.mxu0 %v358
  %v470 = vpop.f32.mrf.mxu0
  %v471 = vadd.f32 0.0, %v470
  %472 = vmatmul.f32.gmra.mxu0 %v361
  %v473 = vpop.f32.mrf.mxu0
  %v474 = vadd.f32 0.0, %v473
  %475 = vmatmul.f32.gmra.mxu0 %v364
  %v476 = vpop.f32.mrf.mxu0
  %v477 = vadd.f32 0.0, %v476
  %478 = vmatmul.f32.gmra.mxu0 %v367
  %v479 = vpop.f32.mrf.mxu0
  %v480 = vadd.f32 0.0, %v479
  %481 = vmatmul.f32.gmra.mxu0 %v370
  %v482 = vpop.f32.mrf.mxu0
  %v483 = vadd.f32 0.0, %v482
  %484 = vmatmul.f32.gmra.mxu0 %v373
  %v485 = vpop.f32.mrf.mxu0
  %v486 = vadd.f32 0.0, %v485
  %487 = vmatmul.f32.gmra.mxu0 %v376
  %v488 = vpop.f32.mrf.mxu0
  %v489 = vadd.f32 0.0, %v488
  %490 = vmatmul.f32.gmra.mxu0 %v379
  %v491 = vpop.f32.mrf.mxu0
  %v492 = vadd.f32 0.0, %v491
  %493 = vmatmul.f32.gmra.mxu0 %v382
  %v494 = vpop.f32.mrf.mxu0
  %v495 = vadd.f32 0.0, %v494
  %496 = vmatmul.f32.gmra.mxu0 %v385
  %v497 = vpop.f32.mrf.mxu0
  %v498 = vadd.f32 0.0, %v497
  %499 = vmatmul.f32.gmra.mxu0 %v388
  %v500 = vpop.f32.mrf.mxu0
  %v501 = vadd.f32 0.0, %v500
  %502 = vdwg.mxu0
  %535 = vrot.lane.b32.xlu0 %v408, 32
  %v536 = vpop.permute.xlu0 %535
  %537 = vrot.lane.b32.xlu0 %v411, 32
  %v538 = vpop.permute.xlu0 %537
  %539 = vrot.lane.b32.xlu0 %v414, 32
  %v540 = vpop.permute.xlu0 %539
  %541 = vrot.lane.b32.xlu0 %v417, 32
  %v542 = vpop.permute.xlu0 %541
  %543 = vrot.lane.b32.xlu0 %v420, 32
  %v544 = vpop.permute.xlu0 %543
  %545 = vrot.lane.b32.xlu0 %v423, 32
  %v546 = vpop.permute.xlu0 %545
  %547 = vrot.lane.b32.xlu0 %v426, 32
  %v548 = vpop.permute.xlu0 %547
  %549 = vrot.lane.b32.xlu0 %v429, 32
  %v550 = vpop.permute.xlu0 %549
  %551 = vrot.lane.b32.xlu0 %v432, 32
  %v552 = vpop.permute.xlu0 %551
  %553 = vrot.lane.b32.xlu0 %v435, 32
  %v554 = vpop.permute.xlu0 %553
  %555 = vrot.lane.b32.xlu0 %v438, 32
  %v556 = vpop.permute.xlu0 %555
  %557 = vrot.lane.b32.xlu0 %v441, 32
  %v558 = vpop.permute.xlu0 %557
  %559 = vrot.lane.b32.xlu0 %v444, 32
  %v560 = vpop.permute.xlu0 %559
  %561 = vrot.lane.b32.xlu0 %v447, 32
  %v562 = vpop.permute.xlu0 %561
  %563 = vrot.lane.b32.xlu0 %v450, 32
  %v564 = vpop.permute.xlu0 %563
  %565 = vrot.lane.b32.xlu0 %v453, 32
  %v566 = vpop.permute.xlu0 %565
  %567 = vrot.lane.b32.xlu0 %v456, 32
  %v568 = vpop.permute.xlu0 %567
  %569 = vrot.lane.b32.xlu0 %v459, 32
  %v570 = vpop.permute.xlu0 %569
  %571 = vrot.lane.b32.xlu0 %v462, 32
  %v572 = vpop.permute.xlu0 %571
  %573 = vrot.lane.b32.xlu0 %v465, 32
  %v574 = vpop.permute.xlu0 %573
  %575 = vrot.lane.b32.xlu0 %v468, 32
  %v576 = vpop.permute.xlu0 %575
  %577 = vrot.lane.b32.xlu0 %v471, 32
  %v578 = vpop.permute.xlu0 %577
  %579 = vrot.lane.b32.xlu0 %v474, 32
  %v580 = vpop.permute.xlu0 %579
  %581 = vrot.lane.b32.xlu0 %v477, 32
  %v582 = vpop.permute.xlu0 %581
  %583 = vrot.lane.b32.xlu0 %v480, 32
  %v584 = vpop.permute.xlu0 %583
  %585 = vrot.lane.b32.xlu0 %v483, 32
  %v586 = vpop.permute.xlu0 %585
  %587 = vrot.lane.b32.xlu0 %v486, 32
  %v588 = vpop.permute.xlu0 %587
  %589 = vrot.lane.b32.xlu0 %v489, 32
  %v590 = vpop.permute.xlu0 %589
  %591 = vrot.lane.b32.xlu0 %v492, 32
  %v592 = vpop.permute.xlu0 %591
  %593 = vrot.lane.b32.xlu0 %v495, 32
  %v594 = vpop.permute.xlu0 %593
  %595 = vrot.lane.b32.xlu0 %v498, 32
  %v596 = vpop.permute.xlu0 %595
  %597 = vrot.lane.b32.xlu0 %v501, 32
  %v598 = vpop.permute.xlu0 %597
  %vm631 = vcmask 261120
  %v632 = vsel %vm631, %v167, %v536
  %v633 = vsel %vm631, %v170, %v538
  %v634 = vsel %vm631, %v173, %v540
  %v635 = vsel %vm631, %v176, %v542
  %v636 = vsel %vm631, %v179, %v544
  %v637 = vsel %vm631, %v182, %v546
  %v638 = vsel %vm631, %v185, %v548
  %v639 = vsel %vm631, %v188, %v550
  %v640 = vsel %vm631, %v191, %v552
  %v641 = vsel %vm631, %v194, %v554
  %v642 = vsel %vm631, %v197, %v556
  %v643 = vsel %vm631, %v200, %v558
  %v644 = vsel %vm631, %v203, %v560
  %v645 = vsel %vm631, %v206, %v562
  %v646 = vsel %vm631, %v209, %v564
  %v647 = vsel %vm631, %v212, %v566
  %v648 = vsel %vm631, %v215, %v568
  %v649 = vsel %vm631, %v218, %v570
  %v650 = vsel %vm631, %v221, %v572
  %v651 = vsel %vm631, %v224, %v574
  %v652 = vsel %vm631, %v227, %v576
  %v653 = vsel %vm631, %v230, %v578
  %v654 = vsel %vm631, %v233, %v580
  %v655 = vsel %vm631, %v236, %v582
  %v656 = vsel %vm631, %v239, %v584
  %v657 = vsel %vm631, %v242, %v586
  %v658 = vsel %vm631, %v245, %v588
  %v659 = vsel %vm631, %v248, %v590
  %v660 = vsel %vm631, %v251, %v592
  %v661 = vsel %vm631, %v254, %v594
  %v662 = vsel %vm631, %v257, %v596
  %v663 = vsel %vm631, %v260, %v598
  %v664 = vpack.c.bf16 %v632, %v632
  %v665 = vpack.c.bf16 %v633, %v633
  %v666 = vpack.c.bf16 %v634, %v634
  %v667 = vpack.c.bf16 %v635, %v635
  %v668 = vpack.c.bf16 %v636, %v636
  %v669 = vpack.c.bf16 %v637, %v637
  %v670 = vpack.c.bf16 %v638, %v638
  %v671 = vpack.c.bf16 %v639, %v639
  %v672 = vpack.c.bf16 %v640, %v640
  %v673 = vpack.c.bf16 %v641, %v641
  %v674 = vpack.c.bf16 %v642, %v642
  %v675 = vpack.c.bf16 %v643, %v643
  %v676 = vpack.c.bf16 %v644, %v644
  %v677 = vpack.c.bf16 %v645, %v645
  %v678 = vpack.c.bf16 %v646, %v646
  %v679 = vpack.c.bf16 %v647, %v647
  %v680 = vpack.c.bf16 %v648, %v648
  %v681 = vpack.c.bf16 %v649, %v649
  %v682 = vpack.c.bf16 %v650, %v650
  %v683 = vpack.c.bf16 %v651, %v651
  %v684 = vpack.c.bf16 %v652, %v652
  %v685 = vpack.c.bf16 %v653, %v653
  %v686 = vpack.c.bf16 %v654, %v654
  %v687 = vpack.c.bf16 %v655, %v655
  %v688 = vpack.c.bf16 %v656, %v656
  %v689 = vpack.c.bf16 %v657, %v657
  %v690 = vpack.c.bf16 %v658, %v658
  %v691 = vpack.c.bf16 %v659, %v659
  %v692 = vpack.c.bf16 %v660, %v660
  %v693 = vpack.c.bf16 %v661, %v661
  %v694 = vpack.c.bf16 %v662, %v662
  %v695 = vpack.c.bf16 %v663, %v663
  %vm696 = vcmask 519168
  %697 = vst.msk [vmem:[%s3] sm:$0xf] %vm696, %v664
  %698 = vst.msk [vmem:[%s3 + $0x4] sm:$0xf] %vm696, %v665
  %699 = vst.msk [vmem:[%s3 + $0x8] sm:$0xf] %vm696, %v666
  %700 = vst.msk [vmem:[%s3 + $0xc] sm:$0xf] %vm696, %v667
  %701 = vst.msk [vmem:[%s3 + $0x10] sm:$0xf] %vm696, %v668
  %702 = vst.msk [vmem:[%s3 + $0x14] sm:$0xf] %vm696, %v669
  %703 = vst.msk [vmem:[%s3 + $0x18] sm:$0xf] %vm696, %v670
  %704 = vst.msk [vmem:[%s3 + $0x1c] sm:$0xf] %vm696, %v671
  %705 = vst.msk [vmem:[%s3 + $0x20] sm:$0xf] %vm696, %v672
  %706 = vst.msk [vmem:[%s3 + $0x24] sm:$0xf] %vm696, %v673
  %707 = vst.msk [vmem:[%s3 + $0x28] sm:$0xf] %vm696, %v674
  %708 = vst.msk [vmem:[%s3 + $0x2c] sm:$0xf] %vm696, %v675
  %709 = vst.msk [vmem:[%s3 + $0x30] sm:$0xf] %vm696, %v676
  %710 = vst.msk [vmem:[%s3 + $0x34] sm:$0xf] %vm696, %v677
  %711 = vst.msk [vmem:[%s3 + $0x38] sm:$0xf] %vm696, %v678
  %712 = vst.msk [vmem:[%s3 + $0x3c] sm:$0xf] %vm696, %v679
  %713 = vst.msk [vmem:[%s3 + $0x40] sm:$0xf] %vm696, %v680
  %714 = vst.msk [vmem:[%s3 + $0x44] sm:$0xf] %vm696, %v681
  %715 = vst.msk [vmem:[%s3 + $0x48] sm:$0xf] %vm696, %v682
  %716 = vst.msk [vmem:[%s3 + $0x4c] sm:$0xf] %vm696, %v683
  %717 = vst.msk [vmem:[%s3 + $0x50] sm:$0xf] %vm696, %v684
  %718 = vst.msk [vmem:[%s3 + $0x54] sm:$0xf] %vm696, %v685
  %719 = vst.msk [vmem:[%s3 + $0x58] sm:$0xf] %vm696, %v686
  %720 = vst.msk [vmem:[%s3 + $0x5c] sm:$0xf] %vm696, %v687
  %721 = vst.msk [vmem:[%s3 + $0x60] sm:$0xf] %vm696, %v688
  %722 = vst.msk [vmem:[%s3 + $0x64] sm:$0xf] %vm696, %v689
  %723 = vst.msk [vmem:[%s3 + $0x68] sm:$0xf] %vm696, %v690
  %724 = vst.msk [vmem:[%s3 + $0x6c] sm:$0xf] %vm696, %v691
  %725 = vst.msk [vmem:[%s3 + $0x70] sm:$0xf] %vm696, %v692
  %726 = vst.msk [vmem:[%s3 + $0x74] sm:$0xf] %vm696, %v693
  %727 = vst.msk [vmem:[%s3 + $0x78] sm:$0xf] %vm696, %v694
  %728 = vst.msk [vmem:[%s3 + $0x7c] sm:$0xf] %vm696, %v695
  // Predicated region
  $region14: #{dgi_forward.3} parent=0 // pred_check
    _
  $region15: #{dgi_forward.3} parent=0 // pred_check_branch
    %730 = sbr.rel (0) target = $region17
  $region16: #{dgi_forward.3} parent=0 // pred_region
    _
  $region17: #{dgi_forward.3} parent=0 // pred_fallthru
    _
  // Predicated region
  $region18: #{dgi_forward.3} parent=0 // pred_check
    _
  $region19: #{dgi_forward.3} parent=0 // pred_check_branch
    %732 = sbr.rel (0) target = $region21
  $region20: #{dgi_forward.3} parent=0 // pred_region
    _
  $region21: #{dgi_forward.3} parent=0 // pred_fallthru
    _

// kernel: dgi_forward.4
$region0: #{dgi_forward.4}
  #allocation0 [shape = 'u32[]', space=smem, size = 0x4, offset = 0x4, fixed_abs, tag = 'smem constant byte address 0x4 - core index']
  #allocation1 [shape = 'u32[72,128]{1,0:T(1,128)}', space=vmem, size = 0x9000, scoped, tag = 'internal scratch']
  #allocation2 [shape = 'f32[1,1]{1,0:T(1,128)S(6)}', space=smem, size = 0x200, scoped, tag = 'scoped memory for dgi_forward.4']
  #allocation3 [shape = 's32[1,1]{1,0:T(1,128)S(6)}', space=smem, size = 0x200, scoped, tag = 'scoped memory for dgi_forward.4']
  %s0 = inlined_call_operand.vmem [shape: bf16[200,256], index: 0, kind: input, shape index: {}]
  %s1 = inlined_call_operand.vmem [shape: bf16[256,64], index: 1, kind: input, shape index: {}]
  %s2 = inlined_call_operand.vmem [shape: f32[1,64], index: 2, kind: input, shape index: {}]
  %s3 = inlined_call_operand.<no memory space> [shape: f32[1,1], index: 3, kind: input, shape index: {}]
  %s4 = inlined_call_operand.<no memory space> [shape: s32[1,1], index: 4, kind: input, shape index: {}]
  %s5 = inlined_call_operand.vmem [shape: f32[200,64], index: 5, kind: output, shape index: {0}]
  %s6 = inlined_call_operand.vmem [shape: f32[1,1,64], index: 6, kind: output, shape index: {1}]
  %7 = xla_tuple %s5, %s6
  %s8 = sld [smem:[#allocation0]]
  $region46: #{dgi_forward.4} parent=0
    _
  %s10 = ssub.s32 1, %s8
  %s11 = scalar_select 0, %s10, %s8
  %12 = sst [smem:[#allocation2]] %s3
  %13 = sst [smem:[#allocation3]] %s4
  // Predicated region
  $region2: #{dgi_forward.4} parent=0 // pred_check
    _
  $region3: #{dgi_forward.4} parent=0 // pred_check_branch
    %15 = sbr.rel (0) target = $region5
  $region4: #{dgi_forward.4} parent=0 // pred_region
    _
  $region5: #{dgi_forward.4} parent=0 // pred_fallthru
    _
  // Predicated region
  $region6: #{dgi_forward.4} parent=0 // pred_check
    _
  $region7: #{dgi_forward.4} parent=0 // pred_check_branch
    %17 = sbr.rel (0) target = $region9
  $region8: #{dgi_forward.4} parent=0 // pred_region
    _
  $region9: #{dgi_forward.4} parent=0 // pred_fallthru
    _
  // Predicated region
  $region10: #{dgi_forward.4} parent=0 // pred_check
    _
  $region11: #{dgi_forward.4} parent=0 // pred_check_branch
    %19 = sbr.rel (0) target = $region13
  $region12: #{dgi_forward.4} parent=0 // pred_region
    _
  $region13: #{dgi_forward.4} parent=0 // pred_fallthru
    _
  // Predicated region
  $region14: #{dgi_forward.4} parent=0 // pred_check
    _
  $region15: #{dgi_forward.4} parent=0 // pred_check_branch
    %21 = sbr.rel (0) target = $region17
  $region16: #{dgi_forward.4} parent=0 // pred_region
    _
  $region17: #{dgi_forward.4} parent=0 // pred_fallthru
    _
  // Predicated region
  $region18: #{dgi_forward.4} parent=0 // pred_check
    _
  $region19: #{dgi_forward.4} parent=0 // pred_check_branch
    %23 = sbr.rel (0) target = $region21
  $region20: #{dgi_forward.4} parent=0 // pred_region
    _
  $region21: #{dgi_forward.4} parent=0 // pred_fallthru
    _
  %p24 = scmp.eq.s32.totalorder 0, 0
  // Predicated region
  $region22: #{dgi_forward.4} parent=0 // pred_check
    %p25 = pneg %p24
  $region23: #{dgi_forward.4} parent=0 // pred_check_branch
    %27 = sbr.rel (%p25) target = $region25
  $region24: #{dgi_forward.4} parent=0 // pred_region
    %vm28 = vcmask 523264
    %29 = vst.msk [vmem:[%s5] sm:$0xff] %vm28, 0.0
    %30 = vst.msk [vmem:[%s5 + $0x8] sm:$0xff] %vm28, 0.0
    %31 = vst.msk [vmem:[%s5 + $0x10] sm:$0xff] %vm28, 0.0
    %32 = vst.msk [vmem:[%s5 + $0x18] sm:$0xff] %vm28, 0.0
    %33 = vst.msk [vmem:[%s5 + $0x20] sm:$0xff] %vm28, 0.0
    %34 = vst.msk [vmem:[%s5 + $0x28] sm:$0xff] %vm28, 0.0
    %35 = vst.msk [vmem:[%s5 + $0x30] sm:$0xff] %vm28, 0.0
    %36 = vst.msk [vmem:[%s5 + $0x38] sm:$0xff] %vm28, 0.0
    %37 = vst.msk [vmem:[%s5 + $0x40] sm:$0xff] %vm28, 0.0
    %38 = vst.msk [vmem:[%s5 + $0x48] sm:$0xff] %vm28, 0.0
    %39 = vst.msk [vmem:[%s5 + $0x50] sm:$0xff] %vm28, 0.0
    %40 = vst.msk [vmem:[%s5 + $0x58] sm:$0xff] %vm28, 0.0
    %41 = vst.msk [vmem:[%s5 + $0x60] sm:$0xff] %vm28, 0.0
    %42 = vst.msk [vmem:[%s5 + $0x68] sm:$0xff] %vm28, 0.0
    %43 = vst.msk [vmem:[%s5 + $0x70] sm:$0xff] %vm28, 0.0
    %44 = vst.msk [vmem:[%s5 + $0x78] sm:$0xff] %vm28, 0.0
    %45 = vst.msk [vmem:[%s5 + $0x80] sm:$0xff] %vm28, 0.0
    %46 = vst.msk [vmem:[%s5 + $0x88] sm:$0xff] %vm28, 0.0
    %47 = vst.msk [vmem:[%s5 + $0x90] sm:$0xff] %vm28, 0.0
    %48 = vst.msk [vmem:[%s5 + $0x98] sm:$0xff] %vm28, 0.0
    %49 = vst.msk [vmem:[%s5 + $0xa0] sm:$0xff] %vm28, 0.0
    %50 = vst.msk [vmem:[%s5 + $0xa8] sm:$0xff] %vm28, 0.0
    %51 = vst.msk [vmem:[%s5 + $0xb0] sm:$0xff] %vm28, 0.0
    %52 = vst.msk [vmem:[%s5 + $0xb8] sm:$0xff] %vm28, 0.0
    %53 = vst.msk [vmem:[%s5 + $0xc0] sm:$0xff] %vm28, 0.0
  $region25: #{dgi_forward.4} parent=0 // pred_fallthru
    _
  %s54 = smul.u32 0, 256
  %s55 = sshra.s32 %s54, 3
  %s56 = sand.u32 %s54, 7
  %s57 = smul.addr %s55, 4
  %s58 = scalar_lea.vmem %s1, %s57
  %v59 = vld [vmem:[%s58] sm:$0xf]
  %v60 = vld [vmem:[%s58 + $0x4] sm:$0xf]
  %v61 = vld [vmem:[%s58 + $0x8] sm:$0xf]
  %v62 = vld [vmem:[%s58 + $0xc] sm:$0xf]
  %v63 = vld [vmem:[%s58 + $0x10] sm:$0xf]
  %v64 = vld [vmem:[%s58 + $0x14] sm:$0xf]
  %v65 = vld [vmem:[%s58 + $0x18] sm:$0xf]
  %v66 = vld [vmem:[%s58 + $0x1c] sm:$0xf]
  %v67 = vld [vmem:[%s58 + $0x20] sm:$0xf]
  %v68 = vld [vmem:[%s58 + $0x24] sm:$0xf]
  %v69 = vld [vmem:[%s58 + $0x28] sm:$0xf]
  %v70 = vld [vmem:[%s58 + $0x2c] sm:$0xf]
  %v71 = vld [vmem:[%s58 + $0x30] sm:$0xf]
  %v72 = vld [vmem:[%s58 + $0x34] sm:$0xf]
  %v73 = vld [vmem:[%s58 + $0x38] sm:$0xf]
  %v74 = vld [vmem:[%s58 + $0x3c] sm:$0xf]
  %v75 = vld [vmem:[%s58 + $0x40] sm:$0xf]
  %v76 = vld [vmem:[%s58 + $0x44] sm:$0xf]
  %v77 = vld [vmem:[%s58 + $0x48] sm:$0xf]
  %v78 = vld [vmem:[%s58 + $0x4c] sm:$0xf]
  %v79 = vld [vmem:[%s58 + $0x50] sm:$0xf]
  %v80 = vld [vmem:[%s58 + $0x54] sm:$0xf]
  %v81 = vld [vmem:[%s58 + $0x58] sm:$0xf]
  %v82 = vld [vmem:[%s58 + $0x5c] sm:$0xf]
  %v83 = vld [vmem:[%s58 + $0x60] sm:$0xf]
  %v84 = vld [vmem:[%s58 + $0x64] sm:$0xf]
  %v85 = vld [vmem:[%s58 + $0x68] sm:$0xf]
  %v86 = vld [vmem:[%s58 + $0x6c] sm:$0xf]
  %v87 = vld [vmem:[%s58 + $0x70] sm:$0xf]
  %v88 = vld [vmem:[%s58 + $0x74] sm:$0xf]
  %v89 = vld [vmem:[%s58 + $0x78] sm:$0xf]
  %v90 = vld [vmem:[%s58 + $0x7c] sm:$0xf]
  %v91 = vld [vmem:[%s5] sm:$0xff]
  %v92 = vld [vmem:[%s5 + $0x8] sm:$0xff]
  %v93 = vld [vmem:[%s5 + $0x10] sm:$0xff]
  %v94 = vld [vmem:[%s5 + $0x18] sm:$0xff]
  %v95 = vld [vmem:[%s5 + $0x20] sm:$0xff]
  %v96 = vld [vmem:[%s5 + $0x28] sm:$0xff]
  %v97 = vld [vmem:[%s5 + $0x30] sm:$0xff]
  %v98 = vld [vmem:[%s5 + $0x38] sm:$0xff]
  %v99 = vld [vmem:[%s5 + $0x40] sm:$0xff]
  %v100 = vld [vmem:[%s5 + $0x48] sm:$0xff]
  %v101 = vld [vmem:[%s5 + $0x50] sm:$0xff]
  %v102 = vld [vmem:[%s5 + $0x58] sm:$0xff]
  %v103 = vld [vmem:[%s5 + $0x60] sm:$0xff]
  %v104 = vld [vmem:[%s5 + $0x68] sm:$0xff]
  %v105 = vld [vmem:[%s5 + $0x70] sm:$0xff]
  %v106 = vld [vmem:[%s5 + $0x78] sm:$0xff]
  %v107 = vld [vmem:[%s5 + $0x80] sm:$0xff]
  %v108 = vld [vmem:[%s5 + $0x88] sm:$0xff]
  %v109 = vld [vmem:[%s5 + $0x90] sm:$0xff]
  %v110 = vld [vmem:[%s5 + $0x98] sm:$0xff]
  %v111 = vld [vmem:[%s5 + $0xa0] sm:$0xff]
  %v112 = vld [vmem:[%s5 + $0xa8] sm:$0xff]
  %v113 = vld [vmem:[%s5 + $0xb0] sm:$0xff]
  %v114 = vld [vmem:[%s5 + $0xb8] sm:$0xff]
  %v115 = vld [vmem:[%s5 + $0xc0] sm:$0xff]
  %v116 = vld [vmem:[%s0] sm:$0xff]
  %v117 = vld [vmem:[%s0 + $0x8] sm:$0xff]
  %v118 = vld [vmem:[%s0 + $0x10] sm:$0xff]
  %v119 = vld [vmem:[%s0 + $0x18] sm:$0xff]
  %v120 = vld [vmem:[%s0 + $0x20] sm:$0xff]
  %v121 = vld [vmem:[%s0 + $0x28] sm:$0xff]
  %v122 = vld [vmem:[%s0 + $0x30] sm:$0xff]
  %v123 = vld [vmem:[%s0 + $0x38] sm:$0xff]
  %v124 = vld [vmem:[%s0 + $0x40] sm:$0xff]
  %v125 = vld [vmem:[%s0 + $0x48] sm:$0xff]
  %v126 = vld [vmem:[%s0 + $0x50] sm:$0xff]
  %v127 = vld [vmem:[%s0 + $0x58] sm:$0xff]
  %v128 = vld [vmem:[%s0 + $0x60] sm:$0xff]
  %v129 = vld [vmem:[%s0 + $0x68] sm:$0xff]
  %v130 = vld [vmem:[%s0 + $0x70] sm:$0xff]
  %v131 = vld [vmem:[%s0 + $0x78] sm:$0xff]
  %v132 = vld [vmem:[%s0 + $0x80] sm:$0xff]
  %v133 = vld [vmem:[%s0 + $0x88] sm:$0xff]
  %v134 = vld [vmem:[%s0 + $0x90] sm:$0xff]
  %v135 = vld [vmem:[%s0 + $0x98] sm:$0xff]
  %v136 = vld [vmem:[%s0 + $0xa0] sm:$0xff]
  %v137 = vld [vmem:[%s0 + $0xa8] sm:$0xff]
  %v138 = vld [vmem:[%s0 + $0xb0] sm:$0xff]
  %v139 = vld [vmem:[%s0 + $0xb8] sm:$0xff]
  %v140 = vld [vmem:[%s0 + $0xc0] sm:$0xff]
  %v166 = vunpack.c.l.b16 %v116
  %v167 = vunpack.c.h.b16 %v116
  %v168 = vunpack.c.l.b16 %v117
  %v169 = vunpack.c.h.b16 %v117
  %v170 = vunpack.c.l.b16 %v118
  %v171 = vunpack.c.h.b16 %v118
  %v172 = vunpack.c.l.b16 %v119
  %v173 = vunpack.c.h.b16 %v119
  %v174 = vunpack.c.l.b16 %v120
  %v175 = vunpack.c.h.b16 %v120
  %v176 = vunpack.c.l.b16 %v121
  %v177 = vunpack.c.h.b16 %v121
  %v178 = vunpack.c.l.b16 %v122
  %v179 = vunpack.c.h.b16 %v122
  %v180 = vunpack.c.l.b16 %v123
  %v181 = vunpack.c.h.b16 %v123
  %v182 = vunpack.c.l.b16 %v124
  %v183 = vunpack.c.h.b16 %v124
  %v184 = vunpack.c.l.b16 %v125
  %v185 = vunpack.c.h.b16 %v125
  %v186 = vunpack.c.l.b16 %v126
  %v187 = vunpack.c.h.b16 %v126
  %v188 = vunpack.c.l.b16 %v127
  %v189 = vunpack.c.h.b16 %v127
  %v190 = vunpack.c.l.b16 %v128
  %v191 = vunpack.c.h.b16 %v128
  %v192 = vunpack.c.l.b16 %v129
  %v193 = vunpack.c.h.b16 %v129
  %v194 = vunpack.c.l.b16 %v130
  %v195 = vunpack.c.h.b16 %v130
  %v196 = vunpack.c.l.b16 %v131
  %v197 = vunpack.c.h.b16 %v131
  %v198 = vunpack.c.l.b16 %v132
  %v199 = vunpack.c.h.b16 %v132
  %v200 = vunpack.c.l.b16 %v133
  %v201 = vunpack.c.h.b16 %v133
  %v202 = vunpack.c.l.b16 %v134
  %v203 = vunpack.c.h.b16 %v134
  %v204 = vunpack.c.l.b16 %v135
  %v205 = vunpack.c.h.b16 %v135
  %v206 = vunpack.c.l.b16 %v136
  %v207 = vunpack.c.h.b16 %v136
  %v208 = vunpack.c.l.b16 %v137
  %v209 = vunpack.c.h.b16 %v137
  %v210 = vunpack.c.l.b16 %v138
  %v211 = vunpack.c.h.b16 %v138
  %v212 = vunpack.c.l.b16 %v139
  %v213 = vunpack.c.h.b16 %v139
  %v214 = vunpack.c.l.b16 %v140
  %v215 = vunpack.c.h.b16 %v140
  %v216 = vpack.c.b16 %v168, %v166
  %v217 = vpack.c.b16 %v169, %v167
  %v218 = vpack.c.b16 %v172, %v170
  %v219 = vpack.c.b16 %v173, %v171
  %v220 = vpack.c.b16 %v176, %v174
  %v221 = vpack.c.b16 %v177, %v175
  %v222 = vpack.c.b16 %v180, %v178
  %v223 = vpack.c.b16 %v181, %v179
  %v224 = vpack.c.b16 %v184, %v182
  %v225 = vpack.c.b16 %v185, %v183
  %v226 = vpack.c.b16 %v188, %v186
  %v227 = vpack.c.b16 %v189, %v187
  %v228 = vpack.c.b16 %v192, %v190
  %v229 = vpack.c.b16 %v193, %v191
  %v230 = vpack.c.b16 %v196, %v194
  %v231 = vpack.c.b16 %v197, %v195
  %v232 = vpack.c.b16 %v200, %v198
  %v233 = vpack.c.b16 %v201, %v199
  %v234 = vpack.c.b16 %v204, %v202
  %v235 = vpack.c.b16 %v205, %v203
  %v236 = vpack.c.b16 %v208, %v206
  %v237 = vpack.c.b16 %v209, %v207
  %v238 = vpack.c.b16 %v212, %v210
  %v239 = vpack.c.b16 %v213, %v211
  %v240 = vpack.c.b16 %v214, %v214
  %v241 = vpack.c.b16 %v215, %v215
  %v300 = vunpack.c.l.b16 %v59
  %v301 = vunpack.c.l.b16 %v60
  %v302 = vunpack.c.l.b16 %v61
  %v303 = vunpack.c.l.b16 %v62
  %v304 = vunpack.c.l.b16 %v63
  %v305 = vunpack.c.l.b16 %v64
  %v306 = vunpack.c.l.b16 %v65
  %v307 = vunpack.c.l.b16 %v66
  %v308 = vunpack.c.l.b16 %v67
  %v309 = vunpack.c.l.b16 %v68
  %v310 = vunpack.c.l.b16 %v69
  %v311 = vunpack.c.l.b16 %v70
  %v312 = vunpack.c.l.b16 %v71
  %v313 = vunpack.c.l.b16 %v72
  %v314 = vunpack.c.l.b16 %v73
  %v315 = vunpack.c.l.b16 %v74
  %v316 = vunpack.c.l.b16 %v75
  %v317 = vunpack.c.l.b16 %v76
  %v318 = vunpack.c.l.b16 %v77
  %v319 = vunpack.c.l.b16 %v78
  %v320 = vunpack.c.l.b16 %v79
  %v321 = vunpack.c.l.b16 %v80
  %v322 = vunpack.c.l.b16 %v81
  %v323 = vunpack.c.l.b16 %v82
  %v324 = vunpack.c.l.b16 %v83
  %v325 = vunpack.c.l.b16 %v84
  %v326 = vunpack.c.l.b16 %v85
  %v327 = vunpack.c.l.b16 %v86
  %v328 = vunpack.c.l.b16 %v87
  %v329 = vunpack.c.l.b16 %v88
  %v330 = vunpack.c.l.b16 %v89
  %v331 = vunpack.c.l.b16 %v90
  %v332 = vpack.c.b16 %v301, %v300
  %v333 = vpack.c.b16 %v303, %v302
  %v334 = vpack.c.b16 %v305, %v304
  %v335 = vpack.c.b16 %v307, %v306
  %v336 = vpack.c.b16 %v309, %v308
  %v337 = vpack.c.b16 %v311, %v310
  %v338 = vpack.c.b16 %v313, %v312
  %v339 = vpack.c.b16 %v315, %v314
  %v340 = vpack.c.b16 %v317, %v316
  %v341 = vpack.c.b16 %v319, %v318
  %v342 = vpack.c.b16 %v321, %v320
  %v343 = vpack.c.b16 %v323, %v322
  %v344 = vpack.c.b16 %v325, %v324
  %v345 = vpack.c.b16 %v327, %v326
  %v346 = vpack.c.b16 %v329, %v328
  %v347 = vpack.c.b16 %v331, %v330
  %364 = vmatpush.bf16.msra.mxu0 %v339
  %365 = vmatpush.bf16.msra.mxu0 %v338
  %366 = vmatpush.bf16.msra.mxu0 %v337
  %367 = vmatpush.bf16.msra.mxu0 %v336
  %368 = vmatpush.bf16.msra.mxu0 %v335
  %369 = vmatpush.bf16.msra.mxu0 %v334
  %370 = vmatpush.bf16.msra.mxu0 %v333
  %371 = vmatpush.bf16.msra.mxu0 %v332
  %372 = vmatmul.bf16.gmra.mxu0 %v216
  %v373 = vpop.f32.mrf.mxu0
  %v374 = vadd.f32 0.0, %v373
  %v375 = vpop.f32.mrf.mxu0
  %v376 = vadd.f32 0.0, %v375
  %377 = vmatmul.bf16.gmra.mxu0 %v218
  %v378 = vpop.f32.mrf.mxu0
  %v379 = vadd.f32 0.0, %v378
  %v380 = vpop.f32.mrf.mxu0
  %v381 = vadd.f32 0.0, %v380
  %382 = vmatmul.bf16.gmra.mxu0 %v220
  %v383 = vpop.f32.mrf.mxu0
  %v384 = vadd.f32 0.0, %v383
  %v385 = vpop.f32.mrf.mxu0
  %v386 = vadd.f32 0.0, %v385
  %387 = vmatmul.bf16.gmra.mxu0 %v222
  %v388 = vpop.f32.mrf.mxu0
  %v389 = vadd.f32 0.0, %v388
  %v390 = vpop.f32.mrf.mxu0
  %v391 = vadd.f32 0.0, %v390
  %392 = vmatmul.bf16.gmra.mxu0 %v224
  %v393 = vpop.f32.mrf.mxu0
  %v394 = vadd.f32 0.0, %v393
  %v395 = vpop.f32.mrf.mxu0
  %v396 = vadd.f32 0.0, %v395
  %397 = vmatmul.bf16.gmra.mxu0 %v226
  %v398 = vpop.f32.mrf.mxu0
  %v399 = vadd.f32 0.0, %v398
  %v400 = vpop.f32.mrf.mxu0
  %v401 = vadd.f32 0.0, %v400
  %402 = vmatmul.bf16.gmra.mxu0 %v228
  %v403 = vpop.f32.mrf.mxu0
  %v404 = vadd.f32 0.0, %v403
  %v405 = vpop.f32.mrf.mxu0
  %v406 = vadd.f32 0.0, %v405
  %407 = vmatmul.bf16.gmra.mxu0 %v230
  %v408 = vpop.f32.mrf.mxu0
  %v409 = vadd.f32 0.0, %v408
  %v410 = vpop.f32.mrf.mxu0
  %v411 = vadd.f32 0.0, %v410
  %412 = vmatmul.bf16.gmra.mxu0 %v232
  %v413 = vpop.f32.mrf.mxu0
  %v414 = vadd.f32 0.0, %v413
  %v415 = vpop.f32.mrf.mxu0
  %v416 = vadd.f32 0.0, %v415
  %417 = vmatmul.bf16.gmra.mxu0 %v234
  %v418 = vpop.f32.mrf.mxu0
  %v419 = vadd.f32 0.0, %v418
  %v420 = vpop.f32.mrf.mxu0
  %v421 = vadd.f32 0.0, %v420
  %422 = vmatmul.bf16.gmra.mxu0 %v236
  %v423 = vpop.f32.mrf.mxu0
  %v424 = vadd.f32 0.0, %v423
  %v425 = vpop.f32.mrf.mxu0
  %v426 = vadd.f32 0.0, %v425
  %427 = vmatmul.bf16.gmra.mxu0 %v238
  %v428 = vpop.f32.mrf.mxu0
  %v429 = vadd.f32 0.0, %v428
  %v430 = vpop.f32.mrf.mxu0
  %v431 = vadd.f32 0.0, %v430
  %432 = vmatmul.bf16.gmra.mxu0 %v240
  %v433 = vpop.f32.mrf.mxu0
  %v434 = vadd.f32 0.0, %v433
  %v435 = vpop.f32.mrf.mxu0
  %436 = vdwg.mxu0
  %437 = vmatpush.bf16.msra.mxu0 %v347
  %438 = vmatpush.bf16.msra.mxu0 %v346
  %439 = vmatpush.bf16.msra.mxu0 %v345
  %440 = vmatpush.bf16.msra.mxu0 %v344
  %441 = vmatpush.bf16.msra.mxu0 %v343
  %442 = vmatpush.bf16.msra.mxu0 %v342
  %443 = vmatpush.bf16.msra.mxu0 %v341
  %444 = vmatpush.bf16.msra.mxu0 %v340
  %445 = vmatmul.bf16.gmra.mxu0 %v217
  %v446 = vpop.f32.mrf.mxu0
  %v447 = vadd.f32 %v374, %v446
  %v448 = vpop.f32.mrf.mxu0
  %v449 = vadd.f32 %v376, %v448
  %450 = vmatmul.bf16.gmra.mxu0 %v219
  %v451 = vpop.f32.mrf.mxu0
  %v452 = vadd.f32 %v379, %v451
  %v453 = vpop.f32.mrf.mxu0
  %v454 = vadd.f32 %v381, %v453
  %455 = vmatmul.bf16.gmra.mxu0 %v221
  %v456 = vpop.f32.mrf.mxu0
  %v457 = vadd.f32 %v384, %v456
  %v458 = vpop.f32.mrf.mxu0
  %v459 = vadd.f32 %v386, %v458
  %460 = vmatmul.bf16.gmra.mxu0 %v223
  %v461 = vpop.f32.mrf.mxu0
  %v462 = vadd.f32 %v389, %v461
  %v463 = vpop.f32.mrf.mxu0
  %v464 = vadd.f32 %v391, %v463
  %465 = vmatmul.bf16.gmra.mxu0 %v225
  %v466 = vpop.f32.mrf.mxu0
  %v467 = vadd.f32 %v394, %v466
  %v468 = vpop.f32.mrf.mxu0
  %v469 = vadd.f32 %v396, %v468
  %470 = vmatmul.bf16.gmra.mxu0 %v227
  %v471 = vpop.f32.mrf.mxu0
  %v472 = vadd.f32 %v399, %v471
  %v473 = vpop.f32.mrf.mxu0
  %v474 = vadd.f32 %v401, %v473
  %475 = vmatmul.bf16.gmra.mxu0 %v229
  %v476 = vpop.f32.mrf.mxu0
  %v477 = vadd.f32 %v404, %v476
  %v478 = vpop.f32.mrf.mxu0
  %v479 = vadd.f32 %v406, %v478
  %480 = vmatmul.bf16.gmra.mxu0 %v231
  %v481 = vpop.f32.mrf.mxu0
  %v482 = vadd.f32 %v409, %v481
  %v483 = vpop.f32.mrf.mxu0
  %v484 = vadd.f32 %v411, %v483
  %485 = vmatmul.bf16.gmra.mxu0 %v233
  %v486 = vpop.f32.mrf.mxu0
  %v487 = vadd.f32 %v414, %v486
  %v488 = vpop.f32.mrf.mxu0
  %v489 = vadd.f32 %v416, %v488
  %490 = vmatmul.bf16.gmra.mxu0 %v235
  %v491 = vpop.f32.mrf.mxu0
  %v492 = vadd.f32 %v419, %v491
  %v493 = vpop.f32.mrf.mxu0
  %v494 = vadd.f32 %v421, %v493
  %495 = vmatmul.bf16.gmra.mxu0 %v237
  %v496 = vpop.f32.mrf.mxu0
  %v497 = vadd.f32 %v424, %v496
  %v498 = vpop.f32.mrf.mxu0
  %v499 = vadd.f32 %v426, %v498
  %500 = vmatmul.bf16.gmra.mxu0 %v239
  %v501 = vpop.f32.mrf.mxu0
  %v502 = vadd.f32 %v429, %v501
  %v503 = vpop.f32.mrf.mxu0
  %v504 = vadd.f32 %v431, %v503
  %505 = vmatmul.bf16.gmra.mxu0 %v241
  %v506 = vpop.f32.mrf.mxu0
  %v507 = vadd.f32 %v434, %v506
  %v508 = vpop.f32.mrf.mxu0
  %509 = vdwg.mxu0
  %v510 = vadd.f32 %v91, %v447
  %v511 = vadd.f32 %v92, %v449
  %v512 = vadd.f32 %v93, %v452
  %v513 = vadd.f32 %v94, %v454
  %v514 = vadd.f32 %v95, %v457
  %v515 = vadd.f32 %v96, %v459
  %v516 = vadd.f32 %v97, %v462
  %v517 = vadd.f32 %v98, %v464
  %v518 = vadd.f32 %v99, %v467
  %v519 = vadd.f32 %v100, %v469
  %v520 = vadd.f32 %v101, %v472
  %v521 = vadd.f32 %v102, %v474
  %v522 = vadd.f32 %v103, %v477
  %v523 = vadd.f32 %v104, %v479
  %v524 = vadd.f32 %v105, %v482
  %v525 = vadd.f32 %v106, %v484
  %v526 = vadd.f32 %v107, %v487
  %v527 = vadd.f32 %v108, %v489
  %v528 = vadd.f32 %v109, %v492
  %v529 = vadd.f32 %v110, %v494
  %v530 = vadd.f32 %v111, %v497
  %v531 = vadd.f32 %v112, %v499
  %v532 = vadd.f32 %v113, %v502
  %v533 = vadd.f32 %v114, %v504
  %v534 = vadd.f32 %v115, %v507
  %vm535 = vcmask 523264
  %536 = vst.msk [vmem:[%s5] sm:$0xff] %vm535, %v510
  %537 = vst.msk [vmem:[%s5 + $0x8] sm:$0xff] %vm535, %v511
  %538 = vst.msk [vmem:[%s5 + $0x10] sm:$0xff] %vm535, %v512
  %539 = vst.msk [vmem:[%s5 + $0x18] sm:$0xff] %vm535, %v513
  %540 = vst.msk [vmem:[%s5 + $0x20] sm:$0xff] %vm535, %v514
  %541 = vst.msk [vmem:[%s5 + $0x28] sm:$0xff] %vm535, %v515
  %542 = vst.msk [vmem:[%s5 + $0x30] sm:$0xff] %vm535, %v516
  %543 = vst.msk [vmem:[%s5 + $0x38] sm:$0xff] %vm535, %v517
  %544 = vst.msk [vmem:[%s5 + $0x40] sm:$0xff] %vm535, %v518
  %545 = vst.msk [vmem:[%s5 + $0x48] sm:$0xff] %vm535, %v519
  %546 = vst.msk [vmem:[%s5 + $0x50] sm:$0xff] %vm535, %v520
  %547 = vst.msk [vmem:[%s5 + $0x58] sm:$0xff] %vm535, %v521
  %548 = vst.msk [vmem:[%s5 + $0x60] sm:$0xff] %vm535, %v522
  %549 = vst.msk [vmem:[%s5 + $0x68] sm:$0xff] %vm535, %v523
  %550 = vst.msk [vmem:[%s5 + $0x70] sm:$0xff] %vm535, %v524
  %551 = vst.msk [vmem:[%s5 + $0x78] sm:$0xff] %vm535, %v525
  %552 = vst.msk [vmem:[%s5 + $0x80] sm:$0xff] %vm535, %v526
  %553 = vst.msk [vmem:[%s5 + $0x88] sm:$0xff] %vm535, %v527
  %554 = vst.msk [vmem:[%s5 + $0x90] sm:$0xff] %vm535, %v528
  %555 = vst.msk [vmem:[%s5 + $0x98] sm:$0xff] %vm535, %v529
  %556 = vst.msk [vmem:[%s5 + $0xa0] sm:$0xff] %vm535, %v530
  %557 = vst.msk [vmem:[%s5 + $0xa8] sm:$0xff] %vm535, %v531
  %558 = vst.msk [vmem:[%s5 + $0xb0] sm:$0xff] %vm535, %v532
  %559 = vst.msk [vmem:[%s5 + $0xb8] sm:$0xff] %vm535, %v533
  %560 = vst.msk [vmem:[%s5 + $0xc0] sm:$0xff] %vm535, %v534
  // Predicated region
  $region26: #{dgi_forward.4} parent=0 // pred_check
    %p561 = pneg %p24
  $region27: #{dgi_forward.4} parent=0 // pred_check_branch
    %563 = sbr.rel (%p561) target = $region29
  $region28: #{dgi_forward.4} parent=0 // pred_region
    %s564 = sld [smem:[#allocation2]]
    %v565 = vld [vmem:[%s5] sm:$0xff]
    %v566 = vld [vmem:[%s5 + $0x8] sm:$0xff]
    %v567 = vld [vmem:[%s5 + $0x10] sm:$0xff]
    %v568 = vld [vmem:[%s5 + $0x18] sm:$0xff]
    %v569 = vld [vmem:[%s5 + $0x20] sm:$0xff]
    %v570 = vld [vmem:[%s5 + $0x28] sm:$0xff]
    %v571 = vld [vmem:[%s5 + $0x30] sm:$0xff]
    %v572 = vld [vmem:[%s5 + $0x38] sm:$0xff]
    %v573 = vld [vmem:[%s5 + $0x40] sm:$0xff]
    %v574 = vld [vmem:[%s5 + $0x48] sm:$0xff]
    %v575 = vld [vmem:[%s5 + $0x50] sm:$0xff]
    %v576 = vld [vmem:[%s5 + $0x58] sm:$0xff]
    %v577 = vld [vmem:[%s5 + $0x60] sm:$0xff]
    %v578 = vld [vmem:[%s5 + $0x68] sm:$0xff]
    %v579 = vld [vmem:[%s5 + $0x70] sm:$0xff]
    %v580 = vld [vmem:[%s5 + $0x78] sm:$0xff]
    %v581 = vld [vmem:[%s5 + $0x80] sm:$0xff]
    %v582 = vld [vmem:[%s5 + $0x88] sm:$0xff]
    %v583 = vld [vmem:[%s5 + $0x90] sm:$0xff]
    %v584 = vld [vmem:[%s5 + $0x98] sm:$0xff]
    %v585 = vld [vmem:[%s5 + $0xa0] sm:$0xff]
    %v586 = vld [vmem:[%s5 + $0xa8] sm:$0xff]
    %v587 = vld [vmem:[%s5 + $0xb0] sm:$0xff]
    %v588 = vld [vmem:[%s5 + $0xb8] sm:$0xff]
    %v589 = vld [vmem:[%s5 + $0xc0] sm:$0xff]
    %v590 = vld [vmem:[%s2] sm:$0x1]
    %v592 = vperm.slane %v590, 0
    %v594 = vadd.f32 %v565, %v592
    %v595 = vadd.f32 %v566, %v592
    %v596 = vadd.f32 %v567, %v592
    %v597 = vadd.f32 %v568, %v592
    %v598 = vadd.f32 %v569, %v592
    %v599 = vadd.f32 %v570, %v592
    %v600 = vadd.f32 %v571, %v592
    %v601 = vadd.f32 %v572, %v592
    %v602 = vadd.f32 %v573, %v592
    %v603 = vadd.f32 %v574, %v592
    %v604 = vadd.f32 %v575, %v592
    %v605 = vadd.f32 %v576, %v592
    %v606 = vadd.f32 %v577, %v592
    %v607 = vadd.f32 %v578, %v592
    %v608 = vadd.f32 %v579, %v592
    %v609 = vadd.f32 %v580, %v592
    %v610 = vadd.f32 %v581, %v592
    %v611 = vadd.f32 %v582, %v592
    %v612 = vadd.f32 %v583, %v592
    %v613 = vadd.f32 %v584, %v592
    %v614 = vadd.f32 %v585, %v592
    %v615 = vadd.f32 %v586, %v592
    %v616 = vadd.f32 %v587, %v592
    %v617 = vadd.f32 %v588, %v592
    %v618 = vadd.f32 %v589, %v592
    %vm619 = vcmp.gt.f32.partialorder %v594, 0.0
    %vm620 = vcmp.gt.f32.partialorder %v595, 0.0
    %vm621 = vcmp.gt.f32.partialorder %v596, 0.0
    %vm622 = vcmp.gt.f32.partialorder %v597, 0.0
    %vm623 = vcmp.gt.f32.partialorder %v598, 0.0
    %vm624 = vcmp.gt.f32.partialorder %v599, 0.0
    %vm625 = vcmp.gt.f32.partialorder %v600, 0.0
    %vm626 = vcmp.gt.f32.partialorder %v601, 0.0
    %vm627 = vcmp.gt.f32.partialorder %v602, 0.0
    %vm628 = vcmp.gt.f32.partialorder %v603, 0.0
    %vm629 = vcmp.gt.f32.partialorder %v604, 0.0
    %vm630 = vcmp.gt.f32.partialorder %v605, 0.0
    %vm631 = vcmp.gt.f32.partialorder %v606, 0.0
    %vm632 = vcmp.gt.f32.partialorder %v607, 0.0
    %vm633 = vcmp.gt.f32.partialorder %v608, 0.0
    %vm634 = vcmp.gt.f32.partialorder %v609, 0.0
    %vm635 = vcmp.gt.f32.partialorder %v610, 0.0
    %vm636 = vcmp.gt.f32.partialorder %v611, 0.0
    %vm637 = vcmp.gt.f32.partialorder %v612, 0.0
    %vm638 = vcmp.gt.f32.partialorder %v613, 0.0
    %vm639 = vcmp.gt.f32.partialorder %v614, 0.0
    %vm640 = vcmp.gt.f32.partialorder %v615, 0.0
    %vm641 = vcmp.gt.f32.partialorder %v616, 0.0
    %vm642 = vcmp.gt.f32.partialorder %v617, 0.0
    %vm643 = vcmp.gt.f32.partialorder %v618, 0.0
    %v644 = vstv %s564
    %v645 = vmul.f32 %v644, %v594
    %v646 = vmul.f32 %v644, %v595
    %v647 = vmul.f32 %v644, %v596
    %v648 = vmul.f32 %v644, %v597
    %v649 = vmul.f32 %v644, %v598
    %v650 = vmul.f32 %v644, %v599
    %v651 = vmul.f32 %v644, %v600
    %v652 = vmul.f32 %v644, %v601
    %v653 = vmul.f32 %v644, %v602
    %v654 = vmul.f32 %v644, %v603
    %v655 = vmul.f32 %v644, %v604
    %v656 = vmul.f32 %v644, %v605
    %v657 = vmul.f32 %v644, %v606
    %v658 = vmul.f32 %v644, %v607
    %v659 = vmul.f32 %v644, %v608
    %v660 = vmul.f32 %v644, %v609
    %v661 = vmul.f32 %v644, %v610
    %v662 = vmul.f32 %v644, %v611
    %v663 = vmul.f32 %v644, %v612
    %v664 = vmul.f32 %v644, %v613
    %v665 = vmul.f32 %v644, %v614
    %v666 = vmul.f32 %v644, %v615
    %v667 = vmul.f32 %v644, %v616
    %v668 = vmul.f32 %v644, %v617
    %v669 = vmul.f32 %v644, %v618
    %v670 = vsel %vm619, %v594, %v645
    %v671 = vsel %vm620, %v595, %v646
    %v672 = vsel %vm621, %v596, %v647
    %v673 = vsel %vm622, %v597, %v648
    %v674 = vsel %vm623, %v598, %v649
    %v675 = vsel %vm624, %v599, %v650
    %v676 = vsel %vm625, %v600, %v651
    %v677 = vsel %vm626, %v601, %v652
    %v678 = vsel %vm627, %v602, %v653
    %v679 = vsel %vm628, %v603, %v654
    %v680 = vsel %vm629, %v604, %v655
    %v681 = vsel %vm630, %v605, %v656
    %v682 = vsel %vm631, %v606, %v657
    %v683 = vsel %vm632, %v607, %v658
    %v684 = vsel %vm633, %v608, %v659
    %v685 = vsel %vm634, %v609, %v660
    %v686 = vsel %vm635, %v610, %v661
    %v687 = vsel %vm636, %v611, %v662
    %v688 = vsel %vm637, %v612, %v663
    %v689 = vsel %vm638, %v613, %v664
    %v690 = vsel %vm639, %v614, %v665
    %v691 = vsel %vm640, %v615, %v666
    %v692 = vsel %vm641, %v616, %v667
    %v693 = vsel %vm642, %v617, %v668
    %v694 = vsel %vm643, %v618, %v669
    %695 = vst.msk [vmem:[%s5] sm:$0xff] %vm535, %v670
    %696 = vst.msk [vmem:[%s5 + $0x8] sm:$0xff] %vm535, %v671
    %697 = vst.msk [vmem:[%s5 + $0x10] sm:$0xff] %vm535, %v672
    %698 = vst.msk [vmem:[%s5 + $0x18] sm:$0xff] %vm535, %v673
    %699 = vst.msk [vmem:[%s5 + $0x20] sm:$0xff] %vm535, %v674
    %700 = vst.msk [vmem:[%s5 + $0x28] sm:$0xff] %vm535, %v675
    %701 = vst.msk [vmem:[%s5 + $0x30] sm:$0xff] %vm535, %v676
    %702 = vst.msk [vmem:[%s5 + $0x38] sm:$0xff] %vm535, %v677
    %703 = vst.msk [vmem:[%s5 + $0x40] sm:$0xff] %vm535, %v678
    %704 = vst.msk [vmem:[%s5 + $0x48] sm:$0xff] %vm535, %v679
    %705 = vst.msk [vmem:[%s5 + $0x50] sm:$0xff] %vm535, %v680
    %706 = vst.msk [vmem:[%s5 + $0x58] sm:$0xff] %vm535, %v681
    %707 = vst.msk [vmem:[%s5 + $0x60] sm:$0xff] %vm535, %v682
    %708 = vst.msk [vmem:[%s5 + $0x68] sm:$0xff] %vm535, %v683
    %709 = vst.msk [vmem:[%s5 + $0x70] sm:$0xff] %vm535, %v684
    %710 = vst.msk [vmem:[%s5 + $0x78] sm:$0xff] %vm535, %v685
    %711 = vst.msk [vmem:[%s5 + $0x80] sm:$0xff] %vm535, %v686
    %712 = vst.msk [vmem:[%s5 + $0x88] sm:$0xff] %vm535, %v687
    %713 = vst.msk [vmem:[%s5 + $0x90] sm:$0xff] %vm535, %v688
    %714 = vst.msk [vmem:[%s5 + $0x98] sm:$0xff] %vm535, %v689
    %715 = vst.msk [vmem:[%s5 + $0xa0] sm:$0xff] %vm535, %v690
    %716 = vst.msk [vmem:[%s5 + $0xa8] sm:$0xff] %vm535, %v691
    %717 = vst.msk [vmem:[%s5 + $0xb0] sm:$0xff] %vm535, %v692
    %718 = vst.msk [vmem:[%s5 + $0xb8] sm:$0xff] %vm535, %v693
    %719 = vst.msk [vmem:[%s5 + $0xc0] sm:$0xff] %vm535, %v694
    %s720 = smul.u32 0, 200
    %v721 = vlaneseq
    %v722 = vshrl.u32 %v721, 7
    %v723 = vadd.s32 %v722, 8
    %v724 = vadd.s32 %v722, 16
    %v725 = vadd.s32 %v722, 24
    %v726 = vadd.s32 %v722, 32
    %v727 = vadd.s32 %v722, 40
    %v728 = vadd.s32 %v722, 48
    %v729 = vadd.s32 %v722, 56
    %v730 = vadd.s32 %v722, 64
    %v731 = vadd.s32 %v722, 72
    %v732 = vadd.s32 %v722, 80
    %v733 = vadd.s32 %v722, 88
    %v734 = vadd.s32 %v722, 96
    %v735 = vadd.s32 %v722, 104
    %v736 = vadd.s32 %v722, 112
    %v737 = vadd.s32 %v722, 120
    %v738 = vadd.s32 %v722, 128
    %v739 = vadd.s32 %v722, 136
    %v740 = vadd.s32 %v722, 144
    %v741 = vadd.s32 %v722, 152
    %v742 = vadd.s32 %v722, 160
    %v743 = vadd.s32 %v722, 168
    %v744 = vadd.s32 %v722, 176
    %v745 = vadd.s32 %v722, 184
    %v746 = vadd.s32 %v722, 192
    %v747 = vstv %s720
    %v748 = vadd.s32 %v747, %v722
    %v749 = vadd.s32 %v747, %v723
    %v750 = vadd.s32 %v747, %v724
    %v751 = vadd.s32 %v747, %v725
    %v752 = vadd.s32 %v747, %v726
    %v753 = vadd.s32 %v747, %v727
    %v754 = vadd.s32 %v747, %v728
    %v755 = vadd.s32 %v747, %v729
    %v756 = vadd.s32 %v747, %v730
    %v757 = vadd.s32 %v747, %v731
    %v758 = vadd.s32 %v747, %v732
    %v759 = vadd.s32 %v747, %v733
    %v760 = vadd.s32 %v747, %v734
    %v761 = vadd.s32 %v747, %v735
    %v762 = vadd.s32 %v747, %v736
    %v763 = vadd.s32 %v747, %v737
    %v764 = vadd.s32 %v747, %v738
    %v765 = vadd.s32 %v747, %v739
    %v766 = vadd.s32 %v747, %v740
    %v767 = vadd.s32 %v747, %v741
    %v768 = vadd.s32 %v747, %v742
    %v769 = vadd.s32 %v747, %v743
    %v770 = vadd.s32 %v747, %v744
    %v771 = vadd.s32 %v747, %v745
    %v772 = vadd.s32 %v747, %v746
    %s773 = sld [smem:[#allocation3]]
    %v774 = vstv %s773
    %vm775 = vcmp.lt.s32.totalorder %v748, %v774
    %vm776 = vcmp.lt.s32.totalorder %v749, %v774
    %vm777 = vcmp.lt.s32.totalorder %v750, %v774
    %vm778 = vcmp.lt.s32.totalorder %v751, %v774
    %vm779 = vcmp.lt.s32.totalorder %v752, %v774
    %vm780 = vcmp.lt.s32.totalorder %v753, %v774
    %vm781 = vcmp.lt.s32.totalorder %v754, %v774
    %vm782 = vcmp.lt.s32.totalorder %v755, %v774
    %vm783 = vcmp.lt.s32.totalorder %v756, %v774
    %vm784 = vcmp.lt.s32.totalorder %v757, %v774
    %vm785 = vcmp.lt.s32.totalorder %v758, %v774
    %vm786 = vcmp.lt.s32.totalorder %v759, %v774
    %vm787 = vcmp.lt.s32.totalorder %v760, %v774
    %vm788 = vcmp.lt.s32.totalorder %v761, %v774
    %vm789 = vcmp.lt.s32.totalorder %v762, %v774
    %vm790 = vcmp.lt.s32.totalorder %v763, %v774
    %vm791 = vcmp.lt.s32.totalorder %v764, %v774
    %vm792 = vcmp.lt.s32.totalorder %v765, %v774
    %vm793 = vcmp.lt.s32.totalorder %v766, %v774
    %vm794 = vcmp.lt.s32.totalorder %v767, %v774
    %vm795 = vcmp.lt.s32.totalorder %v768, %v774
    %vm796 = vcmp.lt.s32.totalorder %v769, %v774
    %vm797 = vcmp.lt.s32.totalorder %v770, %v774
    %vm798 = vcmp.lt.s32.totalorder %v771, %v774
    %vm799 = vcmp.lt.s32.totalorder %v772, %v774
    %v800 = vsel %vm775, 1, 0
    %v801 = vsel %vm776, 1, 0
    %v802 = vsel %vm777, 1, 0
    %v803 = vsel %vm778, 1, 0
    %v804 = vsel %vm779, 1, 0
    %v805 = vsel %vm780, 1, 0
    %v806 = vsel %vm781, 1, 0
    %v807 = vsel %vm782, 1, 0
    %v808 = vsel %vm783, 1, 0
    %v809 = vsel %vm784, 1, 0
    %v810 = vsel %vm785, 1, 0
    %v811 = vsel %vm786, 1, 0
    %v812 = vsel %vm787, 1, 0
    %v813 = vsel %vm788, 1, 0
    %v814 = vsel %vm789, 1, 0
    %v815 = vsel %vm790, 1, 0
    %v816 = vsel %vm791, 1, 0
    %v817 = vsel %vm792, 1, 0
    %v818 = vsel %vm793, 1, 0
    %v819 = vsel %vm794, 1, 0
    %v820 = vsel %vm795, 1, 0
    %v821 = vsel %vm796, 1, 0
    %v822 = vsel %vm797, 1, 0
    %v823 = vsel %vm798, 1, 0
    %v824 = vsel %vm799, 1, 0
    %vm825 = vcmp.eq.s32.totalorder %v800, 1
    %vm826 = vcmp.eq.s32.totalorder %v801, 1
    %vm827 = vcmp.eq.s32.totalorder %v802, 1
    %vm828 = vcmp.eq.s32.totalorder %v803, 1
    %vm829 = vcmp.eq.s32.totalorder %v804, 1
    %vm830 = vcmp.eq.s32.totalorder %v805, 1
    %vm831 = vcmp.eq.s32.totalorder %v806, 1
    %vm832 = vcmp.eq.s32.totalorder %v807, 1
    %vm833 = vcmp.eq.s32.totalorder %v808, 1
    %vm834 = vcmp.eq.s32.totalorder %v809, 1
    %vm835 = vcmp.eq.s32.totalorder %v810, 1
    %vm836 = vcmp.eq.s32.totalorder %v811, 1
    %vm837 = vcmp.eq.s32.totalorder %v812, 1
    %vm838 = vcmp.eq.s32.totalorder %v813, 1
    %vm839 = vcmp.eq.s32.totalorder %v814, 1
    %vm840 = vcmp.eq.s32.totalorder %v815, 1
    %vm841 = vcmp.eq.s32.totalorder %v816, 1
    %vm842 = vcmp.eq.s32.totalorder %v817, 1
    %vm843 = vcmp.eq.s32.totalorder %v818, 1
    %vm844 = vcmp.eq.s32.totalorder %v819, 1
    %vm845 = vcmp.eq.s32.totalorder %v820, 1
    %vm846 = vcmp.eq.s32.totalorder %v821, 1
    %vm847 = vcmp.eq.s32.totalorder %v822, 1
    %vm848 = vcmp.eq.s32.totalorder %v823, 1
    %vm849 = vcmp.eq.s32.totalorder %v824, 1
    %v850 = vsel %vm825, %v670, 0.0
    %v851 = vsel %vm826, %v671, 0.0
    %v852 = vsel %vm827, %v672, 0.0
    %v853 = vsel %vm828, %v673, 0.0
    %v854 = vsel %vm829, %v674, 0.0
    %v855 = vsel %vm830, %v675, 0.0
    %v856 = vsel %vm831, %v676, 0.0
    %v857 = vsel %vm832, %v677, 0.0
    %v858 = vsel %vm833, %v678, 0.0
    %v859 = vsel %vm834, %v679, 0.0
    %v860 = vsel %vm835, %v680, 0.0
    %v861 = vsel %vm836, %v681, 0.0
    %v862 = vsel %vm837, %v682, 0.0
    %v863 = vsel %vm838, %v683, 0.0
    %v864 = vsel %vm839, %v684, 0.0
    %v865 = vsel %vm840, %v685, 0.0
    %v866 = vsel %vm841, %v686, 0.0
    %v867 = vsel %vm842, %v687, 0.0
    %v868 = vsel %vm843, %v688, 0.0
    %v869 = vsel %vm844, %v689, 0.0
    %v870 = vsel %vm845, %v690, 0.0
    %v871 = vsel %vm846, %v691, 0.0
    %v872 = vsel %vm847, %v692, 0.0
    %v873 = vsel %vm848, %v693, 0.0
    %v874 = vsel %vm849, %v694, 0.0
    %v875 = vsel %vm535, %v850, 0.0
    %v876 = vsel %vm535, %v851, 0.0
    %v877 = vadd.f32 %v875, %v876
    %v878 = vsel %vm535, %v852, 0.0
    %v879 = vadd.f32 %v877, %v878
    %v880 = vsel %vm535, %v853, 0.0
    %v881 = vadd.f32 %v879, %v880
    %v882 = vsel %vm535, %v854, 0.0
    %v883 = vadd.f32 %v881, %v882
    %v884 = vsel %vm535, %v855, 0.0
    %v885 = vadd.f32 %v883, %v884
    %v886 = vsel %vm535, %v856, 0.0
    %v887 = vadd.f32 %v885, %v886
    %v888 = vsel %vm535, %v857, 0.0
    %v889 = vadd.f32 %v887, %v888
    %v890 = vsel %vm535, %v858, 0.0
    %v891 = vadd.f32 %v889, %v890
    %v892 = vsel %vm535, %v859, 0.0
    %v893 = vadd.f32 %v891, %v892
    %v894 = vsel %vm535, %v860, 0.0
    %v895 = vadd.f32 %v893, %v894
    %v896 = vsel %vm535, %v861, 0.0
    %v897 = vadd.f32 %v895, %v896
    %v898 = vsel %vm535, %v862, 0.0
    %v899 = vadd.f32 %v897, %v898
    %v900 = vsel %vm535, %v863, 0.0
    %v901 = vadd.f32 %v899, %v900
    %v902 = vsel %vm535, %v864, 0.0
    %v903 = vadd.f32 %v901, %v902
    %v904 = vsel %vm535, %v865, 0.0
    %v905 = vadd.f32 %v903, %v904
    %v906 = vsel %vm535, %v866, 0.0
    %v907 = vadd.f32 %v905, %v906
    %v908 = vsel %vm535, %v867, 0.0
    %v909 = vadd.f32 %v907, %v908
    %v910 = vsel %vm535, %v868, 0.0
    %v911 = vadd.f32 %v909, %v910
    %v912 = vsel %vm535, %v869, 0.0
    %v913 = vadd.f32 %v911, %v912
    %v914 = vsel %vm535, %v870, 0.0
    %v915 = vadd.f32 %v913, %v914
    %v916 = vsel %vm535, %v871, 0.0
    %v917 = vadd.f32 %v915, %v916
    %v918 = vsel %vm535, %v872, 0.0
    %v919 = vadd.f32 %v917, %v918
    %v920 = vsel %vm535, %v873, 0.0
    %v921 = vadd.f32 %v919, %v920
    %v922 = vsel %vm535, %v874, 0.0
    %v923 = vadd.f32 %v921, %v922
    %v924 = vrot.slane %v923, 4
    %v925 = vadd.f32 %v923, %v924
    %v926 = vrot.slane %v925, 2
    %v927 = vadd.f32 %v925, %v926
    %v928 = vrot.slane %v927, 1
    %v929 = vadd.f32 %v927, %v928
    %vm930 = vcmask 516096
    %931 = vst.msk [vmem:[%s6] sm:$0x1] %vm930, %v929
  $region29: #{dgi_forward.4} parent=0 // pred_fallthru
    _
  // Predicated region
  $region30: #{dgi_forward.4} parent=0 // pred_check
    _
  $region31: #{dgi_forward.4} parent=0 // pred_check_branch
    %933 = sbr.rel (0) target = $region33
  $region32: #{dgi_forward.4} parent=0 // pred_region
    _
  $region33: #{dgi_forward.4} parent=0 // pred_fallthru
    _
  // Predicated region
  $region34: #{dgi_forward.4} parent=0 // pred_check
    _
  $region35: #{dgi_forward.4} parent=0 // pred_check_branch
    %935 = sbr.rel (0) target = $region37
  $region36: #{dgi_forward.4} parent=0 // pred_region
    _
  $region37: #{dgi_forward.4} parent=0 // pred_fallthru
    _
  // Predicated region
  $region38: #{dgi_forward.4} parent=0 // pred_check
    _
  $region39: #{dgi_forward.4} parent=0 // pred_check_branch
    %937 = sbr.rel (0) target = $region41
  $region40: #{dgi_forward.4} parent=0 // pred_region
    _
  $region41: #{dgi_forward.4} parent=0 // pred_fallthru
    _
  // Predicated region
  $region42: #{dgi_forward.4} parent=0 // pred_check
    _
  $region43: #{dgi_forward.4} parent=0 // pred_check_branch
    %939 = sbr.rel (0) target = $region45
  $region44: #{dgi_forward.4} parent=0 // pred_region
    _
  $region45: #{dgi_forward.4} parent=0 // pred_fallthru
    _

</llo_original>
